<compile_context>
chip_gen: v6e
topology: v6e:2x2x1
jax: 0.10.0
libtpu: 0.0.40
codegen_flags: <defaults>
</compile_context>

<pallas_src>
import functools

import jax
import jax.numpy as jnp
from jax.experimental import pallas as pl
from jax.experimental.pallas import tpu as pltpu


# ---------------------------------------------------------------------------
# Fused Pallas kernel
# ---------------------------------------------------------------------------

def _qst_encoder_kernel(q_ref, w2v_ref, lstm_ref, fc_ref, out_ref, *,
                        num_layers, seq_len, hidden, in_sizes):
    """q_ref: SMEM [B,S] int32; w2v_ref: [V,E]; lstm_ref: [sum(In+H)+L, 4H];
       fc_ref: [2LH+1, embed]; out_ref: [B, embed]."""
    S, H, L = seq_len, hidden, num_layers
    B = q_ref.shape[0]
    V = w2v_ref.shape[0]
    n_w_rows = sum(in_sizes) + L * H          # bias rows start here

    # ---- fused embedding gather (exact one-hot matmul) + tanh, time-major ----
    toks = []
    for t in range(S):
        for b in range(B):
            toks.append(jnp.full((1, 1), q_ref[b, t], jnp.int32))
    tok_col = jnp.concatenate(toks, axis=0)                         # [S*B, 1]
    onehot = (jax.lax.broadcasted_iota(jnp.int32, (S * B, V), 1)
              == tok_col).astype(jnp.float32)                       # [S*B, V]
    # NOTE: out-of-range ids give a zero embedding here (PyTorch would raise).
    x_flat = jnp.tanh(jnp.dot(onehot, w2v_ref[...],
                              preferred_element_type=jnp.float32))  # [S*B, E]

    finals = []
    row = 0
    for l in range(L):
        in_l = in_sizes[l]
        w_ih = lstm_ref[row:row + in_l, :]                          # [In_l, 4H]
        w_hh = lstm_ref[row + in_l:row + in_l + H, :]               # [H,   4H]
        row += in_l + H
        bias = lstm_ref[n_w_rows + l:n_w_rows + l + 1, :]           # [1,   4H]

        # Hoisted, batched input projection: single MXU op + bias per layer,
        # entirely off the serial recurrence path.
        gx = jnp.dot(x_flat, w_ih, preferred_element_type=jnp.float32) + bias

        def gates_ifgo(g):
            # 2 full-width EUP passes instead of 4 per-gate passes.
            sig = jax.nn.sigmoid(g)
            th = jnp.tanh(g)
            return (sig[:, 0:H], sig[:, H:2 * H],
                    th[:, 2 * H:3 * H], sig[:, 3 * H:4 * H])        # i, f, g, o

        # t = 0 peeled: h = c = 0  ->  no h @ W_hh, no f*c term.
        i_g, _, g_g, o_g = gates_ifgo(gx[0:B, :])
        c = i_g * g_g
        h = o_g * jnp.tanh(c)
        hs = [h]
        for t in range(1, S):                                       # unrolled
            g_t = gx[t * B:(t + 1) * B, :] + jnp.dot(
                h, w_hh, preferred_element_type=jnp.float32)
            i_g, f_g, g_g, o_g = gates_ifgo(g_t)
            c = f_g * c + i_g * g_g
            h = o_g * jnp.tanh(c)
            hs.append(h)

        finals.append((h, c))
        x_flat = jnp.concatenate(hs, axis=0)                        # [S*B, H]

    # torch.cat((hidden, cell), 2).transpose(0,1).reshape(B,-1)
    #   => per batch row: [h_l0, c_l0, h_l1, c_l1, ...]  (lane-dense concat)
    feat = jnp.concatenate([m for hc in finals for m in hc], axis=1)  # [B, 2LH]
    out_ref[...] = (jnp.dot(jnp.tanh(feat), fc_ref[0:2 * L * H, :],
                            preferred_element_type=jnp.float32)
                    + fc_ref[2 * L * H:2 * L * H + 1, :])


# ---------------------------------------------------------------------------
# One-time parameter packing (hoisted out of the per-call path)
# ---------------------------------------------------------------------------

def prepare_qst_encoder_params(params):
    L = int(params["num_layers"])
    H = int(params["w_hh_l0"].shape[1])
    embed = int(params["fc_w"].shape[0])

    blocks, bias_rows, in_sizes = [], [], []
    for l in range(L):
        w_ih = params[f"w_ih_l{l}"]                    # [4H, In_l]
        w_hh = params[f"w_hh_l{l}"]                    # [4H, H]
        in_sizes.append(int(w_ih.shape[1]))
        blocks.append(w_ih.T)                          # [In_l, 4H]
        blocks.append(w_hh.T)                          # [H,    4H]
        bias_rows.append((params[f"b_ih_l{l}"] +
                          params[f"b_hh_l{l}"]).reshape(1, 4 * H))

    return {
        "num_layers": L, "hidden": H, "embed": embed,
        "in_sizes": tuple(in_sizes),
        "word2vec": params["word2vec"].astype(jnp.float32),          # [V, E]
        "lstm_slab": jnp.concatenate(blocks + bias_rows, axis=0
                                     ).astype(jnp.float32),          # [ΣIn+LH+L, 4H]
        "fc_slab": jnp.concatenate([params["fc_w"].T,
                                    params["fc_b"].reshape(1, embed)],
                                   axis=0).astype(jnp.float32),      # [2LH+1, E]
    }


# ---------------------------------------------------------------------------
# Forward wrapper: everything happens inside a single pallas_call
# ---------------------------------------------------------------------------

def qst_encoder_forward(packed, question):
    """question: int32 [B, S]  ->  float32 [B, embed_size]."""
    B, S = question.shape
    L, H, embed = packed["num_layers"], packed["hidden"], packed["embed"]

    kernel = functools.partial(
        _qst_encoder_kernel, num_layers=L, seq_len=int(S), hidden=H,
        in_sizes=packed["in_sizes"])

    grid_spec = pltpu.PrefetchScalarGridSpec(
        num_scalar_prefetch=1,                 # `question` -> SMEM
        grid=(1,),
        in_specs=[pl.BlockSpec(memory_space=pltpu.MemorySpace.VMEM)] * 3,
        out_specs=pl.BlockSpec(memory_space=pltpu.MemorySpace.VMEM),
    )

    return pl.pallas_call(
        kernel,
        out_shape=jax.ShapeDtypeStruct((B, embed), jnp.float32),
        grid_spec=grid_spec,
        compiler_params=pltpu.CompilerParams(
            dimension_semantics=("arbitrary",)),
    )(question.astype(jnp.int32), packed["word2vec"],
      packed["lstm_slab"], packed["fc_slab"])


# ---------------------------------------------------------------------------
# Pure-JAX reference (for numerical verification)
# ---------------------------------------------------------------------------

def _ref_lstm_layer(x_seq, w_ih, w_hh, b_ih, b_hh):
    _, B, _ = x_seq.shape
    H = w_hh.shape[1]

    def step(carry, x):
        h, c = carry
        gates = x @ w_ih.T + h @ w_hh.T + b_ih + b_hh
        i = jax.nn.sigmoid(gates[:, :H])
        f = jax.nn.sigmoid(gates[:, H:2 * H])
        g = jnp.tanh(gates[:, 2 * H:3 * H])
        o = jax.nn.sigmoid(gates[:, 3 * H:])
        c2 = f * c + i * g
        h2 = o * jnp.tanh(c2)
        return (h2, c2), h2

    (h, c), hs = jax.lax.scan(
        step,
        (jnp.zeros((B, H), jnp.float32), jnp.zeros((B, H), jnp.float32)),
        x_seq)
    return hs, h, c


def ref_forward(params, question):
    qst_vec = jnp.tanh(jnp.take(params["word2vec"], question, axis=0))
    x = jnp.transpose(qst_vec, (1, 0, 2))
    finals = []
    for l in range(params["num_layers"]):
        hs, h, c = _ref_lstm_layer(
            x, params[f"w_ih_l{l}"], params[f"w_hh_l{l}"],
            params[f"b_ih_l{l}"], params[f"b_hh_l{l}"])
        finals.append((h, c))
        x = hs
    feat = jnp.concatenate([t for hc in finals for t in hc], axis=1)
    return jnp.tanh(feat) @ params["fc_w"].T + params["fc_b"]


# ---------------------------------------------------------------------------
# Main
# ---------------------------------------------------------------------------

if __name__ == "__main__":
    QST_VOCAB = 30
    WORD_EMBED = 32
    EMBED_SIZE = 32
    NUM_LAYERS = 2
    HIDDEN = 32
    BATCH = 2
    SEQ = 8

    key = jax.random.PRNGKey(0)
    keys = jax.random.split(key, 16)

    def u(k, shape):
        return jax.random.uniform(k, shape, jnp.float32, -0.1, 0.1)

    params = {"num_layers": NUM_LAYERS}
    params["word2vec"] = u(keys[0], (QST_VOCAB, WORD_EMBED))
    kidx = 1
    for l in range(NUM_LAYERS):
        in_size = WORD_EMBED if l == 0 else HIDDEN
        params[f"w_ih_l{l}"] = u(keys[kidx], (4 * HIDDEN, in_size)); kidx += 1
        params[f"w_hh_l{l}"] = u(keys[kidx], (4 * HIDDEN, HIDDEN)); kidx += 1
        params[f"b_ih_l{l}"] = u(keys[kidx], (4 * HIDDEN,)); kidx += 1
        params[f"b_hh_l{l}"] = u(keys[kidx], (4 * HIDDEN,)); kidx += 1
    params["fc_w"] = u(keys[kidx], (EMBED_SIZE, 2 * NUM_LAYERS * HIDDEN)); kidx += 1
    params["fc_b"] = u(keys[kidx], (EMBED_SIZE,)); kidx += 1

    question = jax.random.randint(keys[kidx], (BATCH, SEQ), 0, QST_VOCAB,
                                  jnp.int32)

    packed = prepare_qst_encoder_params(params)   # one-time weight packing
    out = qst_encoder_forward(packed, question)
    out = jax.block_until_ready(out)

    ref = jax.block_until_ready(ref_forward(params, question))
    assert out.shape == (BATCH, EMBED_SIZE)
    assert jnp.allclose(out, ref, atol=1e-5, rtol=1e-5), "mismatch vs reference"

    print("KERNEL_OK")
</pallas_src>

<mosaic_0001>
module attributes {stable_mosaic.version = 11 : i64} {
  func.func @_qst_encoder_kernel(%arg0: i32, %arg1: memref<2x8xi32, #tpu.memory_space<smem>>, %arg2: memref<30x32xf32, #tpu.memory_space<vmem>>, %arg3: memref<130x128xf32, #tpu.memory_space<vmem>>, %arg4: memref<129x32xf32, #tpu.memory_space<vmem>>, %arg5: memref<2x32xf32, #tpu.memory_space<vmem>>) attributes {dimension_semantics = [#tpu.dimension_semantics<arbitrary>], iteration_bounds = array<i64: 1>, scalar_prefetch = 1 : i64, scratch_operands = 0 : i64, tpu.core_type = #tpu.core_type<tc>, window_params = [{pipeline_mode = #tpu.pipeline_mode<synchronous>, transform_indices = @transform_0, window_bounds = array<i64: 30, 32>}, {pipeline_mode = #tpu.pipeline_mode<synchronous>, transform_indices = @transform_1, window_bounds = array<i64: 130, 128>}, {pipeline_mode = #tpu.pipeline_mode<synchronous>, transform_indices = @transform_2, window_bounds = array<i64: 129, 32>}, {pipeline_mode = #tpu.pipeline_mode<synchronous>, transform_indices = @transform_3, window_bounds = array<i64: 2, 32>}]} {
    %c0 = arith.constant 0 : index
    %c0_0 = arith.constant 0 : index
    %0 = memref.load %arg1[%c0, %c0_0] : memref<2x8xi32, #tpu.memory_space<smem>>
    %1 = vector.broadcast %0 : i32 to vector<1x1xi32>
    %c1 = arith.constant 1 : index
    %c0_1 = arith.constant 0 : index
    %2 = memref.load %arg1[%c1, %c0_1] : memref<2x8xi32, #tpu.memory_space<smem>>
    %3 = vector.broadcast %2 : i32 to vector<1x1xi32>
    %c0_2 = arith.constant 0 : index
    %c1_3 = arith.constant 1 : index
    %4 = memref.load %arg1[%c0_2, %c1_3] : memref<2x8xi32, #tpu.memory_space<smem>>
    %5 = vector.broadcast %4 : i32 to vector<1x1xi32>
    %c1_4 = arith.constant 1 : index
    %c1_5 = arith.constant 1 : index
    %6 = memref.load %arg1[%c1_4, %c1_5] : memref<2x8xi32, #tpu.memory_space<smem>>
    %7 = vector.broadcast %6 : i32 to vector<1x1xi32>
    %c0_6 = arith.constant 0 : index
    %c2 = arith.constant 2 : index
    %8 = memref.load %arg1[%c0_6, %c2] : memref<2x8xi32, #tpu.memory_space<smem>>
    %9 = vector.broadcast %8 : i32 to vector<1x1xi32>
    %c1_7 = arith.constant 1 : index
    %c2_8 = arith.constant 2 : index
    %10 = memref.load %arg1[%c1_7, %c2_8] : memref<2x8xi32, #tpu.memory_space<smem>>
    %11 = vector.broadcast %10 : i32 to vector<1x1xi32>
    %c0_9 = arith.constant 0 : index
    %c3 = arith.constant 3 : index
    %12 = memref.load %arg1[%c0_9, %c3] : memref<2x8xi32, #tpu.memory_space<smem>>
    %13 = vector.broadcast %12 : i32 to vector<1x1xi32>
    %c1_10 = arith.constant 1 : index
    %c3_11 = arith.constant 3 : index
    %14 = memref.load %arg1[%c1_10, %c3_11] : memref<2x8xi32, #tpu.memory_space<smem>>
    %15 = vector.broadcast %14 : i32 to vector<1x1xi32>
    %c0_12 = arith.constant 0 : index
    %c4 = arith.constant 4 : index
    %16 = memref.load %arg1[%c0_12, %c4] : memref<2x8xi32, #tpu.memory_space<smem>>
    %17 = vector.broadcast %16 : i32 to vector<1x1xi32>
    %c1_13 = arith.constant 1 : index
    %c4_14 = arith.constant 4 : index
    %18 = memref.load %arg1[%c1_13, %c4_14] : memref<2x8xi32, #tpu.memory_space<smem>>
    %19 = vector.broadcast %18 : i32 to vector<1x1xi32>
    %c0_15 = arith.constant 0 : index
    %c5 = arith.constant 5 : index
    %20 = memref.load %arg1[%c0_15, %c5] : memref<2x8xi32, #tpu.memory_space<smem>>
    %21 = vector.broadcast %20 : i32 to vector<1x1xi32>
    %c1_16 = arith.constant 1 : index
    %c5_17 = arith.constant 5 : index
    %22 = memref.load %arg1[%c1_16, %c5_17] : memref<2x8xi32, #tpu.memory_space<smem>>
    %23 = vector.broadcast %22 : i32 to vector<1x1xi32>
    %c0_18 = arith.constant 0 : index
    %c6 = arith.constant 6 : index
    %24 = memref.load %arg1[%c0_18, %c6] : memref<2x8xi32, #tpu.memory_space<smem>>
    %25 = vector.broadcast %24 : i32 to vector<1x1xi32>
    %c1_19 = arith.constant 1 : index
    %c6_20 = arith.constant 6 : index
    %26 = memref.load %arg1[%c1_19, %c6_20] : memref<2x8xi32, #tpu.memory_space<smem>>
    %27 = vector.broadcast %26 : i32 to vector<1x1xi32>
    %c0_21 = arith.constant 0 : index
    %c7 = arith.constant 7 : index
    %28 = memref.load %arg1[%c0_21, %c7] : memref<2x8xi32, #tpu.memory_space<smem>>
    %29 = vector.broadcast %28 : i32 to vector<1x1xi32>
    %c1_22 = arith.constant 1 : index
    %c7_23 = arith.constant 7 : index
    %30 = memref.load %arg1[%c1_22, %c7_23] : memref<2x8xi32, #tpu.memory_space<smem>>
    %31 = vector.broadcast %30 : i32 to vector<1x1xi32>
    %32 = tpu.concatenate %1, %3, %5, %7, %9, %11, %13, %15, %17, %19, %21, %23, %25, %27, %29, %31 in 0 : vector<1x1xi32>, vector<1x1xi32>, vector<1x1xi32>, vector<1x1xi32>, vector<1x1xi32>, vector<1x1xi32>, vector<1x1xi32>, vector<1x1xi32>, vector<1x1xi32>, vector<1x1xi32>, vector<1x1xi32>, vector<1x1xi32>, vector<1x1xi32>, vector<1x1xi32>, vector<1x1xi32>, vector<1x1xi32> -> vector<16x1xi32>
    %33 = tpu.iota {dimensions = array<i32: 1>} : vector<16x30xi32>
    %34 = vector.broadcast %32 : vector<16x1xi32> to vector<16x30xi32>
    %35 = arith.cmpi eq, %33, %34 : vector<16x30xi32>
    %36 = arith.extui %35 : vector<16x30xi1> to vector<16x30xi32>
    %37 = arith.sitofp %36 : vector<16x30xi32> to vector<16x30xf32>
    %c0_24 = arith.constant 0 : index
    %c0_25 = arith.constant 0 : index
    %38 = vector.load %arg2[%c0_24, %c0_25] : memref<30x32xf32, #tpu.memory_space<vmem>>, vector<30x32xf32>
    %cst = arith.constant dense<0.000000e+00> : vector<16x32xf32>
    %39 = tpu.matmul %37, %38, %cst {dimension_numbers = #tpu.dot_dimension_numbers<[1], [0], [0], [1], [0, 0, 1, 1], [], []>} : vector<16x30xf32>, vector<30x32xf32>, vector<16x32xf32> -> vector<16x32xf32>
    %40 = math.tanh %39 : vector<16x32xf32>
    %c0_26 = arith.constant 0 : index
    %c0_27 = arith.constant 0 : index
    %41 = vector.load %arg3[%c0_26, %c0_27] : memref<130x128xf32, #tpu.memory_space<vmem>>, vector<32x128xf32>
    %c32 = arith.constant 32 : index
    %c0_28 = arith.constant 0 : index
    %42 = vector.load %arg3[%c32, %c0_28] : memref<130x128xf32, #tpu.memory_space<vmem>>, vector<32x128xf32>
    %c128 = arith.constant 128 : index
    %c0_29 = arith.constant 0 : index
    %43 = vector.load %arg3[%c128, %c0_29] : memref<130x128xf32, #tpu.memory_space<vmem>>, vector<1x128xf32>
    %cst_30 = arith.constant dense<0.000000e+00> : vector<16x128xf32>
    %44 = tpu.matmul %40, %41, %cst_30 {dimension_numbers = #tpu.dot_dimension_numbers<[1], [0], [0], [1], [0, 0, 1, 1], [], []>} : vector<16x32xf32>, vector<32x128xf32>, vector<16x128xf32> -> vector<16x128xf32>
    %45 = vector.broadcast %43 : vector<1x128xf32> to vector<16x128xf32>
    %46 = arith.addf %44, %45 : vector<16x128xf32>
    %47 = vector.extract_strided_slice %46 {offsets = [0, 0], sizes = [2, 128], strides = [1, 1]} : vector<16x128xf32> to vector<2x128xf32>
    %48 = arith.negf %47 : vector<2x128xf32>
    %49 = math.exp %48 : vector<2x128xf32>
    %cst_31 = arith.constant 1.000000e+00 : f32
    %50 = vector.broadcast %cst_31 : f32 to vector<2x128xf32>
    %51 = arith.addf %50, %49 : vector<2x128xf32>
    %52 = arith.divf %50, %51 : vector<2x128xf32>
    %53 = math.tanh %47 : vector<2x128xf32>
    %54 = vector.extract_strided_slice %52 {offsets = [0, 0], sizes = [2, 32], strides = [1, 1]} : vector<2x128xf32> to vector<2x32xf32>
    %55 = vector.extract_strided_slice %53 {offsets = [0, 64], sizes = [2, 32], strides = [1, 1]} : vector<2x128xf32> to vector<2x32xf32>
    %56 = vector.extract_strided_slice %52 {offsets = [0, 96], sizes = [2, 32], strides = [1, 1]} : vector<2x128xf32> to vector<2x32xf32>
    %57 = arith.mulf %54, %55 : vector<2x32xf32>
    %58 = math.tanh %57 : vector<2x32xf32>
    %59 = arith.mulf %56, %58 : vector<2x32xf32>
    %60 = vector.extract_strided_slice %46 {offsets = [2, 0], sizes = [2, 128], strides = [1, 1]} : vector<16x128xf32> to vector<2x128xf32>
    %cst_32 = arith.constant dense<0.000000e+00> : vector<2x128xf32>
    %61 = tpu.matmul %59, %42, %cst_32 {dimension_numbers = #tpu.dot_dimension_numbers<[1], [0], [0], [1], [0, 0, 1, 1], [], []>} : vector<2x32xf32>, vector<32x128xf32>, vector<2x128xf32> -> vector<2x128xf32>
    %62 = arith.addf %60, %61 : vector<2x128xf32>
    %63 = arith.negf %62 : vector<2x128xf32>
    %64 = math.exp %63 : vector<2x128xf32>
    %cst_33 = arith.constant 1.000000e+00 : f32
    %65 = vector.broadcast %cst_33 : f32 to vector<2x128xf32>
    %66 = arith.addf %65, %64 : vector<2x128xf32>
    %67 = arith.divf %65, %66 : vector<2x128xf32>
    %68 = math.tanh %62 : vector<2x128xf32>
    %69 = vector.extract_strided_slice %67 {offsets = [0, 0], sizes = [2, 32], strides = [1, 1]} : vector<2x128xf32> to vector<2x32xf32>
    %70 = vector.extract_strided_slice %67 {offsets = [0, 32], sizes = [2, 32], strides = [1, 1]} : vector<2x128xf32> to vector<2x32xf32>
    %71 = vector.extract_strided_slice %68 {offsets = [0, 64], sizes = [2, 32], strides = [1, 1]} : vector<2x128xf32> to vector<2x32xf32>
    %72 = vector.extract_strided_slice %67 {offsets = [0, 96], sizes = [2, 32], strides = [1, 1]} : vector<2x128xf32> to vector<2x32xf32>
    %73 = arith.mulf %70, %57 : vector<2x32xf32>
    %74 = arith.mulf %69, %71 : vector<2x32xf32>
    %75 = arith.addf %73, %74 : vector<2x32xf32>
    %76 = math.tanh %75 : vector<2x32xf32>
    %77 = arith.mulf %72, %76 : vector<2x32xf32>
    %78 = vector.extract_strided_slice %46 {offsets = [4, 0], sizes = [2, 128], strides = [1, 1]} : vector<16x128xf32> to vector<2x128xf32>
    %cst_34 = arith.constant dense<0.000000e+00> : vector<2x128xf32>
    %79 = tpu.matmul %77, %42, %cst_34 {dimension_numbers = #tpu.dot_dimension_numbers<[1], [0], [0], [1], [0, 0, 1, 1], [], []>} : vector<2x32xf32>, vector<32x128xf32>, vector<2x128xf32> -> vector<2x128xf32>
    %80 = arith.addf %78, %79 : vector<2x128xf32>
    %81 = arith.negf %80 : vector<2x128xf32>
    %82 = math.exp %81 : vector<2x128xf32>
    %cst_35 = arith.constant 1.000000e+00 : f32
    %83 = vector.broadcast %cst_35 : f32 to vector<2x128xf32>
    %84 = arith.addf %83, %82 : vector<2x128xf32>
    %85 = arith.divf %83, %84 : vector<2x128xf32>
    %86 = math.tanh %80 : vector<2x128xf32>
    %87 = vector.extract_strided_slice %85 {offsets = [0, 0], sizes = [2, 32], strides = [1, 1]} : vector<2x128xf32> to vector<2x32xf32>
    %88 = vector.extract_strided_slice %85 {offsets = [0, 32], sizes = [2, 32], strides = [1, 1]} : vector<2x128xf32> to vector<2x32xf32>
    %89 = vector.extract_strided_slice %86 {offsets = [0, 64], sizes = [2, 32], strides = [1, 1]} : vector<2x128xf32> to vector<2x32xf32>
    %90 = vector.extract_strided_slice %85 {offsets = [0, 96], sizes = [2, 32], strides = [1, 1]} : vector<2x128xf32> to vector<2x32xf32>
    %91 = arith.mulf %88, %75 : vector<2x32xf32>
    %92 = arith.mulf %87, %89 : vector<2x32xf32>
    %93 = arith.addf %91, %92 : vector<2x32xf32>
    %94 = math.tanh %93 : vector<2x32xf32>
    %95 = arith.mulf %90, %94 : vector<2x32xf32>
    %96 = vector.extract_strided_slice %46 {offsets = [6, 0], sizes = [2, 128], strides = [1, 1]} : vector<16x128xf32> to vector<2x128xf32>
    %cst_36 = arith.constant dense<0.000000e+00> : vector<2x128xf32>
    %97 = tpu.matmul %95, %42, %cst_36 {dimension_numbers = #tpu.dot_dimension_numbers<[1], [0], [0], [1], [0, 0, 1, 1], [], []>} : vector<2x32xf32>, vector<32x128xf32>, vector<2x128xf32> -> vector<2x128xf32>
    %98 = arith.addf %96, %97 : vector<2x128xf32>
    %99 = arith.negf %98 : vector<2x128xf32>
    %100 = math.exp %99 : vector<2x128xf32>
    %cst_37 = arith.constant 1.000000e+00 : f32
    %101 = vector.broadcast %cst_37 : f32 to vector<2x128xf32>
    %102 = arith.addf %101, %100 : vector<2x128xf32>
    %103 = arith.divf %101, %102 : vector<2x128xf32>
    %104 = math.tanh %98 : vector<2x128xf32>
    %105 = vector.extract_strided_slice %103 {offsets = [0, 0], sizes = [2, 32], strides = [1, 1]} : vector<2x128xf32> to vector<2x32xf32>
    %106 = vector.extract_strided_slice %103 {offsets = [0, 32], sizes = [2, 32], strides = [1, 1]} : vector<2x128xf32> to vector<2x32xf32>
    %107 = vector.extract_strided_slice %104 {offsets = [0, 64], sizes = [2, 32], strides = [1, 1]} : vector<2x128xf32> to vector<2x32xf32>
    %108 = vector.extract_strided_slice %103 {offsets = [0, 96], sizes = [2, 32], strides = [1, 1]} : vector<2x128xf32> to vector<2x32xf32>
    %109 = arith.mulf %106, %93 : vector<2x32xf32>
    %110 = arith.mulf %105, %107 : vector<2x32xf32>
    %111 = arith.addf %109, %110 : vector<2x32xf32>
    %112 = math.tanh %111 : vector<2x32xf32>
    %113 = arith.mulf %108, %112 : vector<2x32xf32>
    %114 = vector.extract_strided_slice %46 {offsets = [8, 0], sizes = [2, 128], strides = [1, 1]} : vector<16x128xf32> to vector<2x128xf32>
    %cst_38 = arith.constant dense<0.000000e+00> : vector<2x128xf32>
    %115 = tpu.matmul %113, %42, %cst_38 {dimension_numbers = #tpu.dot_dimension_numbers<[1], [0], [0], [1], [0, 0, 1, 1], [], []>} : vector<2x32xf32>, vector<32x128xf32>, vector<2x128xf32> -> vector<2x128xf32>
    %116 = arith.addf %114, %115 : vector<2x128xf32>
    %117 = arith.negf %116 : vector<2x128xf32>
    %118 = math.exp %117 : vector<2x128xf32>
    %cst_39 = arith.constant 1.000000e+00 : f32
    %119 = vector.broadcast %cst_39 : f32 to vector<2x128xf32>
    %120 = arith.addf %119, %118 : vector<2x128xf32>
    %121 = arith.divf %119, %120 : vector<2x128xf32>
    %122 = math.tanh %116 : vector<2x128xf32>
    %123 = vector.extract_strided_slice %121 {offsets = [0, 0], sizes = [2, 32], strides = [1, 1]} : vector<2x128xf32> to vector<2x32xf32>
    %124 = vector.extract_strided_slice %121 {offsets = [0, 32], sizes = [2, 32], strides = [1, 1]} : vector<2x128xf32> to vector<2x32xf32>
    %125 = vector.extract_strided_slice %122 {offsets = [0, 64], sizes = [2, 32], strides = [1, 1]} : vector<2x128xf32> to vector<2x32xf32>
    %126 = vector.extract_strided_slice %121 {offsets = [0, 96], sizes = [2, 32], strides = [1, 1]} : vector<2x128xf32> to vector<2x32xf32>
    %127 = arith.mulf %124, %111 : vector<2x32xf32>
    %128 = arith.mulf %123, %125 : vector<2x32xf32>
    %129 = arith.addf %127, %128 : vector<2x32xf32>
    %130 = math.tanh %129 : vector<2x32xf32>
    %131 = arith.mulf %126, %130 : vector<2x32xf32>
    %132 = vector.extract_strided_slice %46 {offsets = [10, 0], sizes = [2, 128], strides = [1, 1]} : vector<16x128xf32> to vector<2x128xf32>
    %cst_40 = arith.constant dense<0.000000e+00> : vector<2x128xf32>
    %133 = tpu.matmul %131, %42, %cst_40 {dimension_numbers = #tpu.dot_dimension_numbers<[1], [0], [0], [1], [0, 0, 1, 1], [], []>} : vector<2x32xf32>, vector<32x128xf32>, vector<2x128xf32> -> vector<2x128xf32>
    %134 = arith.addf %132, %133 : vector<2x128xf32>
    %135 = arith.negf %134 : vector<2x128xf32>
    %136 = math.exp %135 : vector<2x128xf32>
    %cst_41 = arith.constant 1.000000e+00 : f32
    %137 = vector.broadcast %cst_41 : f32 to vector<2x128xf32>
    %138 = arith.addf %137, %136 : vector<2x128xf32>
    %139 = arith.divf %137, %138 : vector<2x128xf32>
    %140 = math.tanh %134 : vector<2x128xf32>
    %141 = vector.extract_strided_slice %139 {offsets = [0, 0], sizes = [2, 32], strides = [1, 1]} : vector<2x128xf32> to vector<2x32xf32>
    %142 = vector.extract_strided_slice %139 {offsets = [0, 32], sizes = [2, 32], strides = [1, 1]} : vector<2x128xf32> to vector<2x32xf32>
    %143 = vector.extract_strided_slice %140 {offsets = [0, 64], sizes = [2, 32], strides = [1, 1]} : vector<2x128xf32> to vector<2x32xf32>
    %144 = vector.extract_strided_slice %139 {offsets = [0, 96], sizes = [2, 32], strides = [1, 1]} : vector<2x128xf32> to vector<2x32xf32>
    %145 = arith.mulf %142, %129 : vector<2x32xf32>
    %146 = arith.mulf %141, %143 : vector<2x32xf32>
    %147 = arith.addf %145, %146 : vector<2x32xf32>
    %148 = math.tanh %147 : vector<2x32xf32>
    %149 = arith.mulf %144, %148 : vector<2x32xf32>
    %150 = vector.extract_strided_slice %46 {offsets = [12, 0], sizes = [2, 128], strides = [1, 1]} : vector<16x128xf32> to vector<2x128xf32>
    %cst_42 = arith.constant dense<0.000000e+00> : vector<2x128xf32>
    %151 = tpu.matmul %149, %42, %cst_42 {dimension_numbers = #tpu.dot_dimension_numbers<[1], [0], [0], [1], [0, 0, 1, 1], [], []>} : vector<2x32xf32>, vector<32x128xf32>, vector<2x128xf32> -> vector<2x128xf32>
    %152 = arith.addf %150, %151 : vector<2x128xf32>
    %153 = arith.negf %152 : vector<2x128xf32>
    %154 = math.exp %153 : vector<2x128xf32>
    %cst_43 = arith.constant 1.000000e+00 : f32
    %155 = vector.broadcast %cst_43 : f32 to vector<2x128xf32>
    %156 = arith.addf %155, %154 : vector<2x128xf32>
    %157 = arith.divf %155, %156 : vector<2x128xf32>
    %158 = math.tanh %152 : vector<2x128xf32>
    %159 = vector.extract_strided_slice %157 {offsets = [0, 0], sizes = [2, 32], strides = [1, 1]} : vector<2x128xf32> to vector<2x32xf32>
    %160 = vector.extract_strided_slice %157 {offsets = [0, 32], sizes = [2, 32], strides = [1, 1]} : vector<2x128xf32> to vector<2x32xf32>
    %161 = vector.extract_strided_slice %158 {offsets = [0, 64], sizes = [2, 32], strides = [1, 1]} : vector<2x128xf32> to vector<2x32xf32>
    %162 = vector.extract_strided_slice %157 {offsets = [0, 96], sizes = [2, 32], strides = [1, 1]} : vector<2x128xf32> to vector<2x32xf32>
    %163 = arith.mulf %160, %147 : vector<2x32xf32>
    %164 = arith.mulf %159, %161 : vector<2x32xf32>
    %165 = arith.addf %163, %164 : vector<2x32xf32>
    %166 = math.tanh %165 : vector<2x32xf32>
    %167 = arith.mulf %162, %166 : vector<2x32xf32>
    %168 = vector.extract_strided_slice %46 {offsets = [14, 0], sizes = [2, 128], strides = [1, 1]} : vector<16x128xf32> to vector<2x128xf32>
    %cst_44 = arith.constant dense<0.000000e+00> : vector<2x128xf32>
    %169 = tpu.matmul %167, %42, %cst_44 {dimension_numbers = #tpu.dot_dimension_numbers<[1], [0], [0], [1], [0, 0, 1, 1], [], []>} : vector<2x32xf32>, vector<32x128xf32>, vector<2x128xf32> -> vector<2x128xf32>
    %170 = arith.addf %168, %169 : vector<2x128xf32>
    %171 = arith.negf %170 : vector<2x128xf32>
    %172 = math.exp %171 : vector<2x128xf32>
    %cst_45 = arith.constant 1.000000e+00 : f32
    %173 = vector.broadcast %cst_45 : f32 to vector<2x128xf32>
    %174 = arith.addf %173, %172 : vector<2x128xf32>
    %175 = arith.divf %173, %174 : vector<2x128xf32>
    %176 = math.tanh %170 : vector<2x128xf32>
    %177 = vector.extract_strided_slice %175 {offsets = [0, 0], sizes = [2, 32], strides = [1, 1]} : vector<2x128xf32> to vector<2x32xf32>
    %178 = vector.extract_strided_slice %175 {offsets = [0, 32], sizes = [2, 32], strides = [1, 1]} : vector<2x128xf32> to vector<2x32xf32>
    %179 = vector.extract_strided_slice %176 {offsets = [0, 64], sizes = [2, 32], strides = [1, 1]} : vector<2x128xf32> to vector<2x32xf32>
    %180 = vector.extract_strided_slice %175 {offsets = [0, 96], sizes = [2, 32], strides = [1, 1]} : vector<2x128xf32> to vector<2x32xf32>
    %181 = arith.mulf %178, %165 : vector<2x32xf32>
    %182 = arith.mulf %177, %179 : vector<2x32xf32>
    %183 = arith.addf %181, %182 : vector<2x32xf32>
    %184 = math.tanh %183 : vector<2x32xf32>
    %185 = arith.mulf %180, %184 : vector<2x32xf32>
    %186 = tpu.concatenate %59, %77, %95, %113, %131, %149, %167, %185 in 0 : vector<2x32xf32>, vector<2x32xf32>, vector<2x32xf32>, vector<2x32xf32>, vector<2x32xf32>, vector<2x32xf32>, vector<2x32xf32>, vector<2x32xf32> -> vector<16x32xf32>
    %c64 = arith.constant 64 : index
    %c0_46 = arith.constant 0 : index
    %187 = vector.load %arg3[%c64, %c0_46] : memref<130x128xf32, #tpu.memory_space<vmem>>, vector<32x128xf32>
    %c96 = arith.constant 96 : index
    %c0_47 = arith.constant 0 : index
    %188 = vector.load %arg3[%c96, %c0_47] : memref<130x128xf32, #tpu.memory_space<vmem>>, vector<32x128xf32>
    %c129 = arith.constant 129 : index
    %c0_48 = arith.constant 0 : index
    %189 = vector.load %arg3[%c129, %c0_48] : memref<130x128xf32, #tpu.memory_space<vmem>>, vector<1x128xf32>
    %cst_49 = arith.constant dense<0.000000e+00> : vector<16x128xf32>
    %190 = tpu.matmul %186, %187, %cst_49 {dimension_numbers = #tpu.dot_dimension_numbers<[1], [0], [0], [1], [0, 0, 1, 1], [], []>} : vector<16x32xf32>, vector<32x128xf32>, vector<16x128xf32> -> vector<16x128xf32>
    %191 = vector.broadcast %189 : vector<1x128xf32> to vector<16x128xf32>
    %192 = arith.addf %190, %191 : vector<16x128xf32>
    %193 = vector.extract_strided_slice %192 {offsets = [0, 0], sizes = [2, 128], strides = [1, 1]} : vector<16x128xf32> to vector<2x128xf32>
    %194 = arith.negf %193 : vector<2x128xf32>
    %195 = math.exp %194 : vector<2x128xf32>
    %cst_50 = arith.constant 1.000000e+00 : f32
    %196 = vector.broadcast %cst_50 : f32 to vector<2x128xf32>
    %197 = arith.addf %196, %195 : vector<2x128xf32>
    %198 = arith.divf %196, %197 : vector<2x128xf32>
    %199 = math.tanh %193 : vector<2x128xf32>
    %200 = vector.extract_strided_slice %198 {offsets = [0, 0], sizes = [2, 32], strides = [1, 1]} : vector<2x128xf32> to vector<2x32xf32>
    %201 = vector.extract_strided_slice %199 {offsets = [0, 64], sizes = [2, 32], strides = [1, 1]} : vector<2x128xf32> to vector<2x32xf32>
    %202 = vector.extract_strided_slice %198 {offsets = [0, 96], sizes = [2, 32], strides = [1, 1]} : vector<2x128xf32> to vector<2x32xf32>
    %203 = arith.mulf %200, %201 : vector<2x32xf32>
    %204 = math.tanh %203 : vector<2x32xf32>
    %205 = arith.mulf %202, %204 : vector<2x32xf32>
    %206 = vector.extract_strided_slice %192 {offsets = [2, 0], sizes = [2, 128], strides = [1, 1]} : vector<16x128xf32> to vector<2x128xf32>
    %cst_51 = arith.constant dense<0.000000e+00> : vector<2x128xf32>
    %207 = tpu.matmul %205, %188, %cst_51 {dimension_numbers = #tpu.dot_dimension_numbers<[1], [0], [0], [1], [0, 0, 1, 1], [], []>} : vector<2x32xf32>, vector<32x128xf32>, vector<2x128xf32> -> vector<2x128xf32>
    %208 = arith.addf %206, %207 : vector<2x128xf32>
    %209 = arith.negf %208 : vector<2x128xf32>
    %210 = math.exp %209 : vector<2x128xf32>
    %cst_52 = arith.constant 1.000000e+00 : f32
    %211 = vector.broadcast %cst_52 : f32 to vector<2x128xf32>
    %212 = arith.addf %211, %210 : vector<2x128xf32>
    %213 = arith.divf %211, %212 : vector<2x128xf32>
    %214 = math.tanh %208 : vector<2x128xf32>
    %215 = vector.extract_strided_slice %213 {offsets = [0, 0], sizes = [2, 32], strides = [1, 1]} : vector<2x128xf32> to vector<2x32xf32>
    %216 = vector.extract_strided_slice %213 {offsets = [0, 32], sizes = [2, 32], strides = [1, 1]} : vector<2x128xf32> to vector<2x32xf32>
    %217 = vector.extract_strided_slice %214 {offsets = [0, 64], sizes = [2, 32], strides = [1, 1]} : vector<2x128xf32> to vector<2x32xf32>
    %218 = vector.extract_strided_slice %213 {offsets = [0, 96], sizes = [2, 32], strides = [1, 1]} : vector<2x128xf32> to vector<2x32xf32>
    %219 = arith.mulf %216, %203 : vector<2x32xf32>
    %220 = arith.mulf %215, %217 : vector<2x32xf32>
    %221 = arith.addf %219, %220 : vector<2x32xf32>
    %222 = math.tanh %221 : vector<2x32xf32>
    %223 = arith.mulf %218, %222 : vector<2x32xf32>
    %224 = vector.extract_strided_slice %192 {offsets = [4, 0], sizes = [2, 128], strides = [1, 1]} : vector<16x128xf32> to vector<2x128xf32>
    %cst_53 = arith.constant dense<0.000000e+00> : vector<2x128xf32>
    %225 = tpu.matmul %223, %188, %cst_53 {dimension_numbers = #tpu.dot_dimension_numbers<[1], [0], [0], [1], [0, 0, 1, 1], [], []>} : vector<2x32xf32>, vector<32x128xf32>, vector<2x128xf32> -> vector<2x128xf32>
    %226 = arith.addf %224, %225 : vector<2x128xf32>
    %227 = arith.negf %226 : vector<2x128xf32>
    %228 = math.exp %227 : vector<2x128xf32>
    %cst_54 = arith.constant 1.000000e+00 : f32
    %229 = vector.broadcast %cst_54 : f32 to vector<2x128xf32>
    %230 = arith.addf %229, %228 : vector<2x128xf32>
    %231 = arith.divf %229, %230 : vector<2x128xf32>
    %232 = math.tanh %226 : vector<2x128xf32>
    %233 = vector.extract_strided_slice %231 {offsets = [0, 0], sizes = [2, 32], strides = [1, 1]} : vector<2x128xf32> to vector<2x32xf32>
    %234 = vector.extract_strided_slice %231 {offsets = [0, 32], sizes = [2, 32], strides = [1, 1]} : vector<2x128xf32> to vector<2x32xf32>
    %235 = vector.extract_strided_slice %232 {offsets = [0, 64], sizes = [2, 32], strides = [1, 1]} : vector<2x128xf32> to vector<2x32xf32>
    %236 = vector.extract_strided_slice %231 {offsets = [0, 96], sizes = [2, 32], strides = [1, 1]} : vector<2x128xf32> to vector<2x32xf32>
    %237 = arith.mulf %234, %221 : vector<2x32xf32>
    %238 = arith.mulf %233, %235 : vector<2x32xf32>
    %239 = arith.addf %237, %238 : vector<2x32xf32>
    %240 = math.tanh %239 : vector<2x32xf32>
    %241 = arith.mulf %236, %240 : vector<2x32xf32>
    %242 = vector.extract_strided_slice %192 {offsets = [6, 0], sizes = [2, 128], strides = [1, 1]} : vector<16x128xf32> to vector<2x128xf32>
    %cst_55 = arith.constant dense<0.000000e+00> : vector<2x128xf32>
    %243 = tpu.matmul %241, %188, %cst_55 {dimension_numbers = #tpu.dot_dimension_numbers<[1], [0], [0], [1], [0, 0, 1, 1], [], []>} : vector<2x32xf32>, vector<32x128xf32>, vector<2x128xf32> -> vector<2x128xf32>
    %244 = arith.addf %242, %243 : vector<2x128xf32>
    %245 = arith.negf %244 : vector<2x128xf32>
    %246 = math.exp %245 : vector<2x128xf32>
    %cst_56 = arith.constant 1.000000e+00 : f32
    %247 = vector.broadcast %cst_56 : f32 to vector<2x128xf32>
    %248 = arith.addf %247, %246 : vector<2x128xf32>
    %249 = arith.divf %247, %248 : vector<2x128xf32>
    %250 = math.tanh %244 : vector<2x128xf32>
    %251 = vector.extract_strided_slice %249 {offsets = [0, 0], sizes = [2, 32], strides = [1, 1]} : vector<2x128xf32> to vector<2x32xf32>
    %252 = vector.extract_strided_slice %249 {offsets = [0, 32], sizes = [2, 32], strides = [1, 1]} : vector<2x128xf32> to vector<2x32xf32>
    %253 = vector.extract_strided_slice %250 {offsets = [0, 64], sizes = [2, 32], strides = [1, 1]} : vector<2x128xf32> to vector<2x32xf32>
    %254 = vector.extract_strided_slice %249 {offsets = [0, 96], sizes = [2, 32], strides = [1, 1]} : vector<2x128xf32> to vector<2x32xf32>
    %255 = arith.mulf %252, %239 : vector<2x32xf32>
    %256 = arith.mulf %251, %253 : vector<2x32xf32>
    %257 = arith.addf %255, %256 : vector<2x32xf32>
    %258 = math.tanh %257 : vector<2x32xf32>
    %259 = arith.mulf %254, %258 : vector<2x32xf32>
    %260 = vector.extract_strided_slice %192 {offsets = [8, 0], sizes = [2, 128], strides = [1, 1]} : vector<16x128xf32> to vector<2x128xf32>
    %cst_57 = arith.constant dense<0.000000e+00> : vector<2x128xf32>
    %261 = tpu.matmul %259, %188, %cst_57 {dimension_numbers = #tpu.dot_dimension_numbers<[1], [0], [0], [1], [0, 0, 1, 1], [], []>} : vector<2x32xf32>, vector<32x128xf32>, vector<2x128xf32> -> vector<2x128xf32>
    %262 = arith.addf %260, %261 : vector<2x128xf32>
    %263 = arith.negf %262 : vector<2x128xf32>
    %264 = math.exp %263 : vector<2x128xf32>
    %cst_58 = arith.constant 1.000000e+00 : f32
    %265 = vector.broadcast %cst_58 : f32 to vector<2x128xf32>
    %266 = arith.addf %265, %264 : vector<2x128xf32>
    %267 = arith.divf %265, %266 : vector<2x128xf32>
    %268 = math.tanh %262 : vector<2x128xf32>
    %269 = vector.extract_strided_slice %267 {offsets = [0, 0], sizes = [2, 32], strides = [1, 1]} : vector<2x128xf32> to vector<2x32xf32>
    %270 = vector.extract_strided_slice %267 {offsets = [0, 32], sizes = [2, 32], strides = [1, 1]} : vector<2x128xf32> to vector<2x32xf32>
    %271 = vector.extract_strided_slice %268 {offsets = [0, 64], sizes = [2, 32], strides = [1, 1]} : vector<2x128xf32> to vector<2x32xf32>
    %272 = vector.extract_strided_slice %267 {offsets = [0, 96], sizes = [2, 32], strides = [1, 1]} : vector<2x128xf32> to vector<2x32xf32>
    %273 = arith.mulf %270, %257 : vector<2x32xf32>
    %274 = arith.mulf %269, %271 : vector<2x32xf32>
    %275 = arith.addf %273, %274 : vector<2x32xf32>
    %276 = math.tanh %275 : vector<2x32xf32>
    %277 = arith.mulf %272, %276 : vector<2x32xf32>
    %278 = vector.extract_strided_slice %192 {offsets = [10, 0], sizes = [2, 128], strides = [1, 1]} : vector<16x128xf32> to vector<2x128xf32>
    %cst_59 = arith.constant dense<0.000000e+00> : vector<2x128xf32>
    %279 = tpu.matmul %277, %188, %cst_59 {dimension_numbers = #tpu.dot_dimension_numbers<[1], [0], [0], [1], [0, 0, 1, 1], [], []>} : vector<2x32xf32>, vector<32x128xf32>, vector<2x128xf32> -> vector<2x128xf32>
    %280 = arith.addf %278, %279 : vector<2x128xf32>
    %281 = arith.negf %280 : vector<2x128xf32>
    %282 = math.exp %281 : vector<2x128xf32>
    %cst_60 = arith.constant 1.000000e+00 : f32
    %283 = vector.broadcast %cst_60 : f32 to vector<2x128xf32>
    %284 = arith.addf %283, %282 : vector<2x128xf32>
    %285 = arith.divf %283, %284 : vector<2x128xf32>
    %286 = math.tanh %280 : vector<2x128xf32>
    %287 = vector.extract_strided_slice %285 {offsets = [0, 0], sizes = [2, 32], strides = [1, 1]} : vector<2x128xf32> to vector<2x32xf32>
    %288 = vector.extract_strided_slice %285 {offsets = [0, 32], sizes = [2, 32], strides = [1, 1]} : vector<2x128xf32> to vector<2x32xf32>
    %289 = vector.extract_strided_slice %286 {offsets = [0, 64], sizes = [2, 32], strides = [1, 1]} : vector<2x128xf32> to vector<2x32xf32>
    %290 = vector.extract_strided_slice %285 {offsets = [0, 96], sizes = [2, 32], strides = [1, 1]} : vector<2x128xf32> to vector<2x32xf32>
    %291 = arith.mulf %288, %275 : vector<2x32xf32>
    %292 = arith.mulf %287, %289 : vector<2x32xf32>
    %293 = arith.addf %291, %292 : vector<2x32xf32>
    %294 = math.tanh %293 : vector<2x32xf32>
    %295 = arith.mulf %290, %294 : vector<2x32xf32>
    %296 = vector.extract_strided_slice %192 {offsets = [12, 0], sizes = [2, 128], strides = [1, 1]} : vector<16x128xf32> to vector<2x128xf32>
    %cst_61 = arith.constant dense<0.000000e+00> : vector<2x128xf32>
    %297 = tpu.matmul %295, %188, %cst_61 {dimension_numbers = #tpu.dot_dimension_numbers<[1], [0], [0], [1], [0, 0, 1, 1], [], []>} : vector<2x32xf32>, vector<32x128xf32>, vector<2x128xf32> -> vector<2x128xf32>
    %298 = arith.addf %296, %297 : vector<2x128xf32>
    %299 = arith.negf %298 : vector<2x128xf32>
    %300 = math.exp %299 : vector<2x128xf32>
    %cst_62 = arith.constant 1.000000e+00 : f32
    %301 = vector.broadcast %cst_62 : f32 to vector<2x128xf32>
    %302 = arith.addf %301, %300 : vector<2x128xf32>
    %303 = arith.divf %301, %302 : vector<2x128xf32>
    %304 = math.tanh %298 : vector<2x128xf32>
    %305 = vector.extract_strided_slice %303 {offsets = [0, 0], sizes = [2, 32], strides = [1, 1]} : vector<2x128xf32> to vector<2x32xf32>
    %306 = vector.extract_strided_slice %303 {offsets = [0, 32], sizes = [2, 32], strides = [1, 1]} : vector<2x128xf32> to vector<2x32xf32>
    %307 = vector.extract_strided_slice %304 {offsets = [0, 64], sizes = [2, 32], strides = [1, 1]} : vector<2x128xf32> to vector<2x32xf32>
    %308 = vector.extract_strided_slice %303 {offsets = [0, 96], sizes = [2, 32], strides = [1, 1]} : vector<2x128xf32> to vector<2x32xf32>
    %309 = arith.mulf %306, %293 : vector<2x32xf32>
    %310 = arith.mulf %305, %307 : vector<2x32xf32>
    %311 = arith.addf %309, %310 : vector<2x32xf32>
    %312 = math.tanh %311 : vector<2x32xf32>
    %313 = arith.mulf %308, %312 : vector<2x32xf32>
    %314 = vector.extract_strided_slice %192 {offsets = [14, 0], sizes = [2, 128], strides = [1, 1]} : vector<16x128xf32> to vector<2x128xf32>
    %cst_63 = arith.constant dense<0.000000e+00> : vector<2x128xf32>
    %315 = tpu.matmul %313, %188, %cst_63 {dimension_numbers = #tpu.dot_dimension_numbers<[1], [0], [0], [1], [0, 0, 1, 1], [], []>} : vector<2x32xf32>, vector<32x128xf32>, vector<2x128xf32> -> vector<2x128xf32>
    %316 = arith.addf %314, %315 : vector<2x128xf32>
    %317 = arith.negf %316 : vector<2x128xf32>
    %318 = math.exp %317 : vector<2x128xf32>
    %cst_64 = arith.constant 1.000000e+00 : f32
    %319 = vector.broadcast %cst_64 : f32 to vector<2x128xf32>
    %320 = arith.addf %319, %318 : vector<2x128xf32>
    %321 = arith.divf %319, %320 : vector<2x128xf32>
    %322 = math.tanh %316 : vector<2x128xf32>
    %323 = vector.extract_strided_slice %321 {offsets = [0, 0], sizes = [2, 32], strides = [1, 1]} : vector<2x128xf32> to vector<2x32xf32>
    %324 = vector.extract_strided_slice %321 {offsets = [0, 32], sizes = [2, 32], strides = [1, 1]} : vector<2x128xf32> to vector<2x32xf32>
    %325 = vector.extract_strided_slice %322 {offsets = [0, 64], sizes = [2, 32], strides = [1, 1]} : vector<2x128xf32> to vector<2x32xf32>
    %326 = vector.extract_strided_slice %321 {offsets = [0, 96], sizes = [2, 32], strides = [1, 1]} : vector<2x128xf32> to vector<2x32xf32>
    %327 = arith.mulf %324, %311 : vector<2x32xf32>
    %328 = arith.mulf %323, %325 : vector<2x32xf32>
    %329 = arith.addf %327, %328 : vector<2x32xf32>
    %330 = math.tanh %329 : vector<2x32xf32>
    %331 = arith.mulf %326, %330 : vector<2x32xf32>
    %332 = tpu.concatenate %185, %183, %331, %329 in 1 : vector<2x32xf32>, vector<2x32xf32>, vector<2x32xf32>, vector<2x32xf32> -> vector<2x128xf32>
    %333 = math.tanh %332 : vector<2x128xf32>
    %c0_65 = arith.constant 0 : index
    %c0_66 = arith.constant 0 : index
    %334 = vector.load %arg4[%c0_65, %c0_66] : memref<129x32xf32, #tpu.memory_space<vmem>>, vector<128x32xf32>
    %cst_67 = arith.constant dense<0.000000e+00> : vector<2x32xf32>
    %335 = tpu.matmul %333, %334, %cst_67 {dimension_numbers = #tpu.dot_dimension_numbers<[1], [0], [0], [1], [0, 0, 1, 1], [], []>} : vector<2x128xf32>, vector<128x32xf32>, vector<2x32xf32> -> vector<2x32xf32>
    %c128_68 = arith.constant 128 : index
    %c0_69 = arith.constant 0 : index
    %336 = vector.load %arg4[%c128_68, %c0_69] : memref<129x32xf32, #tpu.memory_space<vmem>>, vector<1x32xf32>
    %337 = vector.broadcast %336 : vector<1x32xf32> to vector<2x32xf32>
    %338 = arith.addf %335, %337 : vector<2x32xf32>
    %c0_70 = arith.constant 0 : index
    %c0_71 = arith.constant 0 : index
    %339 = vector.load %arg5[%c0_70, %c0_71] : memref<2x32xf32, #tpu.memory_space<vmem>>, vector<2x32xf32>
    tpu.vector_store %arg5[%c0_70, %c0_71], %338 {strides = array<i32>} : memref<2x32xf32, #tpu.memory_space<vmem>>, vector<2x32xf32>,
    return
  }
  func.func @transform_0(%arg0: i32, %arg1: memref<2x8xi32, #tpu.memory_space<smem>>) -> (i32, i32) {
    %c0_i32 = arith.constant 0 : i32
    %c0_i32_0 = arith.constant 0 : i32
    %c0_i32_1 = arith.constant 0 : i32
    return %c0_i32, %c0_i32_0 : i32, i32
  }
  func.func @transform_1(%arg0: i32, %arg1: memref<2x8xi32, #tpu.memory_space<smem>>) -> (i32, i32) {
    %c0_i32 = arith.constant 0 : i32
    %c0_i32_0 = arith.constant 0 : i32
    %c0_i32_1 = arith.constant 0 : i32
    return %c0_i32, %c0_i32_0 : i32, i32
  }
  func.func @transform_2(%arg0: i32, %arg1: memref<2x8xi32, #tpu.memory_space<smem>>) -> (i32, i32) {
    %c0_i32 = arith.constant 0 : i32
    %c0_i32_0 = arith.constant 0 : i32
    %c0_i32_1 = arith.constant 0 : i32
    return %c0_i32, %c0_i32_0 : i32, i32
  }
  func.func @transform_3(%arg0: i32, %arg1: memref<2x8xi32, #tpu.memory_space<smem>>) -> (i32, i32) {
    %c0_i32 = arith.constant 0 : i32
    %c0_i32_0 = arith.constant 0 : i32
    %c0_i32_1 = arith.constant 0 : i32
    return %c0_i32, %c0_i32_0 : i32, i32
  }
}

</mosaic_0001>

<llo_original>
// kernel: tpu_custom_call.1
$region0: #{tpu_custom_call.1}
  #allocation0 [shape = 'u32[]', space=smem, size = 0x4, offset = 0x4, fixed_abs, tag = 'smem constant byte address 0x4 - core index']
  #allocation1 [shape = 'u32[144,128]{1,0:T(1,128)}', space=vmem, size = 0x12000, scoped, tag = 'internal scratch']
  #allocation2 [shape = 's32[1]{0}', space=sflag, size = 0x4, scoped, tag = 'scoped memory for tpu_custom_call.1']
  #allocation3 [shape = 'u8[1024]{0}', space=smem, size = 0x400, scoped, tag = 'prefetched SMEM operand 0']
  %s0 = inlined_call_operand.vmem [shape: s32[2,8], index: 0, kind: input, shape index: {}]
  %s1 = inlined_call_operand.vmem [shape: f32[30,32], index: 1, kind: input, shape index: {}]
  %s2 = inlined_call_operand.vmem [shape: f32[130,128], index: 2, kind: input, shape index: {}]
  %s3 = inlined_call_operand.vmem [shape: f32[129,32], index: 3, kind: input, shape index: {}]
  %s4 = inlined_call_operand.hbm [shape: f32[2,32], index: 4, kind: output, shape index: {}]
  %s5 = sld [smem:[#allocation0]]
  $region22: #{tpu_custom_call.1} parent=0
    _
  %s7 = ssub.s32 1, %s5
  %s8 = scalar_select 0, %s7, %s5
  %s9 = sshll.u32 %s0, 4
  %s10 = int_to_ptr.vmem [resolvable:$true] %s9
  %12 = dma.vmem_to_smem %s10, 32, [#allocation3], [#allocation2]
  %13 = dma.done [#allocation2], 32
  %14 = sfence
  $region1: #{tpu_custom_call.1} parent=0
    #allocation4 [shape = 'u8[1024]{0}', space=vmem, size = 0x400, scoped, tag = 'output window, operand 0, single buffered']
    #allocation5 [shape = 's32[1]{0}', space=sflag, size = 0x4, scoped, tag = 'scoped memory for tpu_custom_call.1']
    %15 = vsyncpa [#allocation5], 0
    // Predicated region
    $region2: #{tpu_custom_call.1} parent=1 // pred_check
      _
    $region3: #{tpu_custom_call.1} parent=1 // pred_check_branch
      %17 = sbr.rel (0) target = $region5
    $region4: #{tpu_custom_call.1} parent=1 // pred_region
      _
    $region5: #{tpu_custom_call.1} parent=1 // pred_fallthru
      _
    // Predicated region
    $region6: #{tpu_custom_call.1} parent=1 // pred_check
      _
    $region7: #{tpu_custom_call.1} parent=1 // pred_check_branch
      %19 = sbr.rel (0) target = $region9
    $region8: #{tpu_custom_call.1} parent=1 // pred_region
      _
    $region9: #{tpu_custom_call.1} parent=1 // pred_fallthru
      _
    // Predicated region
    $region10: #{tpu_custom_call.1} parent=1 // pred_check
      _
    $region11: #{tpu_custom_call.1} parent=1 // pred_check_branch
      %21 = sbr.rel (0) target = $region13
    $region12: #{tpu_custom_call.1} parent=1 // pred_region
      _
    $region13: #{tpu_custom_call.1} parent=1 // pred_fallthru
      _
    %s22 = sld [smem:[#allocation3]]
    %v23 = vstv %s22
    %s24 = sld [smem:[#allocation3 + $0x80]]
    %v25 = vstv %s24
    %s26 = sld [smem:[#allocation3 + $0x1]]
    %v27 = vstv %s26
    %s28 = sld [smem:[#allocation3 + $0x81]]
    %v29 = vstv %s28
    %s30 = sld [smem:[#allocation3 + $0x2]]
    %v31 = vstv %s30
    %s32 = sld [smem:[#allocation3 + $0x82]]
    %v33 = vstv %s32
    %s34 = sld [smem:[#allocation3 + $0x3]]
    %v35 = vstv %s34
    %s36 = sld [smem:[#allocation3 + $0x83]]
    %v37 = vstv %s36
    %s38 = sld [smem:[#allocation3 + $0x4]]
    %v39 = vstv %s38
    %s40 = sld [smem:[#allocation3 + $0x84]]
    %v41 = vstv %s40
    %s42 = sld [smem:[#allocation3 + $0x5]]
    %v43 = vstv %s42
    %s44 = sld [smem:[#allocation3 + $0x85]]
    %v45 = vstv %s44
    %s46 = sld [smem:[#allocation3 + $0x6]]
    %v47 = vstv %s46
    %s48 = sld [smem:[#allocation3 + $0x86]]
    %v49 = vstv %s48
    %s50 = sld [smem:[#allocation3 + $0x7]]
    %v51 = vstv %s50
    %s52 = sld [smem:[#allocation3 + $0x87]]
    %v53 = vstv %s52
    %vm54 = vcmask 1040384
    %v55 = vsel %vm54, %v23, %v25
    %vm56 = vcmask 1041408
    %v57 = vsel %vm56, %v55, %v27
    %vm58 = vcmask 1042432
    %v59 = vsel %vm58, %v57, %v29
    %vm60 = vcmask 1043456
    %v61 = vsel %vm60, %v59, %v31
    %vm62 = vcmask 1044480
    %v63 = vsel %vm62, %v61, %v33
    %vm64 = vcmask 1045504
    %v65 = vsel %vm64, %v63, %v35
    %vm66 = vcmask 1046528
    %v67 = vsel %vm66, %v65, %v37
    %v68 = vsel %vm54, %v39, %v41
    %v69 = vsel %vm56, %v68, %v43
    %v70 = vsel %vm58, %v69, %v45
    %v71 = vsel %vm60, %v70, %v47
    %v72 = vsel %vm62, %v71, %v49
    %v73 = vsel %vm64, %v72, %v51
    %v74 = vsel %vm66, %v73, %v53
    %v75 = vlaneseq
    %v76 = vand.u32 %v75, 127
    %77 = vset.pattern.permute.xlu0 0
    %78 = vperm.xlu0 %77, %v67
    %v79 = vpop.permute.xlu0 %78
    %80 = vset.pattern.permute.xlu0 0
    %81 = vperm.xlu0 %80, %v74
    %v82 = vpop.permute.xlu0 %81
    %vm83 = vcmp.eq.s32.totalorder %v76, %v79
    %vm84 = vcmp.eq.s32.totalorder %v76, %v82
    %v85 = vsel %vm83, 1, 0
    %v86 = vsel %vm84, 1, 0
    %v87 = vcvt.s32.f32 %v85
    %v88 = vcvt.s32.f32 %v86
    %v89 = vld [vmem:[%s1] sm:$0xff]
    %v90 = vld [vmem:[%s1 + $0x8] sm:$0xff]
    %v91 = vld [vmem:[%s1 + $0x10] sm:$0xff]
    %v92 = vld [vmem:[%s1 + $0x18] sm:$0x3f]
    %vm93 = vcmask 244736
    %v95 = vsel %vm93, %v87, 0
    %v98 = vsel %vm93, %v88, 0
    %v101 = vsel %vm64, %v92, 0
    %103 = vmatprep.subr.mxu0 0.0
    %104 = vmatpush1.msra.mxu0 0.0
    %105 = vmatprep.subr.mxu0 0.0
    %106 = vmatpush1.msra.mxu0 0.0
    %107 = vmatprep.subr.mxu0 0.0
    %108 = vmatpush1.msra.mxu0 0.0
    %109 = vmatprep.subr.mxu0 0.0
    %110 = vmatpush1.msra.mxu0 0.0
    %111 = vmatprep.subr.mxu0 0.0
    %112 = vmatpush1.msra.mxu0 0.0
    %113 = vmatprep.subr.mxu0 0.0
    %114 = vmatpush1.msra.mxu0 0.0
    %115 = vmatprep.subr.mxu0 0.0
    %116 = vmatpush1.msra.mxu0 0.0
    %117 = vmatprep.subr.mxu0 0.0
    %118 = vmatpush1.msra.mxu0 0.0
    %119 = vmatprep.subr.mxu0 0.0
    %120 = vmatpush1.msra.mxu0 0.0
    %121 = vmatprep.subr.mxu0 0.0
    %122 = vmatpush1.msra.mxu0 0.0
    %123 = vmatprep.subr.mxu0 0.0
    %124 = vmatpush1.msra.mxu0 0.0
    %125 = vmatprep.subr.mxu0 0.0
    %126 = vmatpush1.msra.mxu0 0.0
    %127 = vmatprep.subr.mxu0 0.0
    %128 = vmatpush1.msra.mxu0 %v101
    %129 = vmatprep.subr.mxu0 0.0
    %130 = vmatpush1.msra.mxu0 %v91
    %131 = vmatprep.subr.mxu0 0.0
    %132 = vmatpush1.msra.mxu0 %v90
    %133 = vmatprep.subr.mxu0 0.0
    %134 = vmatpush1.msra.mxu0 %v89
    %135 = vmatprep.subr.mxu0 0.0
    %136 = vmatpush2.msra.mxu0 0.0
    %137 = vmatprep.subr.mxu0 0.0
    %138 = vmatpush2.msra.mxu0 0.0
    %139 = vmatprep.subr.mxu0 0.0
    %140 = vmatpush2.msra.mxu0 0.0
    %141 = vmatprep.subr.mxu0 0.0
    %142 = vmatpush2.msra.mxu0 0.0
    %143 = vmatprep.subr.mxu0 0.0
    %144 = vmatpush2.msra.mxu0 0.0
    %145 = vmatprep.subr.mxu0 0.0
    %146 = vmatpush2.msra.mxu0 0.0
    %147 = vmatprep.subr.mxu0 0.0
    %148 = vmatpush2.msra.mxu0 0.0
    %149 = vmatprep.subr.mxu0 0.0
    %150 = vmatpush2.msra.mxu0 0.0
    %151 = vmatprep.subr.mxu0 0.0
    %152 = vmatpush2.msra.mxu0 0.0
    %153 = vmatprep.subr.mxu0 0.0
    %154 = vmatpush2.msra.mxu0 0.0
    %155 = vmatprep.subr.mxu0 0.0
    %156 = vmatpush2.msra.mxu0 0.0
    %157 = vmatprep.subr.mxu0 0.0
    %158 = vmatpush2.msra.mxu0 0.0
    %159 = vmatprep.subr.mxu0 0.0
    %160 = vmatpush2.msra.mxu0 0.0
    %161 = vmatprep.subr.mxu0 0.0
    %162 = vmatpush2.msra.mxu0 0.0
    %163 = vmatprep.subr.mxu0 0.0
    %164 = vmatpush2.msra.mxu0 0.0
    %165 = vmatprep.subr.mxu0 0.0
    %166 = vmatpush2.msra.mxu0 0.0
    %167 = vmatprep.mubr.f32.mxu0 0.0
    %168 = vmatmul.mubr.f32.gmra.mxu0 %v95
    %v169 = vpop.f32.mrf.mxu0
    %v170 = vadd.f32 0.0, %v169
    %v171 = vpop.f32.mrf.mxu0
    %172 = vmatprep.mubr.f32.mxu0 0.0
    %173 = vmatmul.mubr.f32.gmra.mxu0 %v98
    %v174 = vpop.f32.mrf.mxu0
    %v175 = vadd.f32 0.0, %v174
    %v176 = vpop.f32.mrf.mxu0
    %177 = vdwg.mxu0
    %v178 = vtanh.pop %v170
    %v179 = vtanh.pop %v175
    %v180 = vld [vmem:[%s2] sm:$0xff]
    %v181 = vld [vmem:[%s2 + $0x8] sm:$0xff]
    %v182 = vld [vmem:[%s2 + $0x10] sm:$0xff]
    %v183 = vld [vmem:[%s2 + $0x18] sm:$0xff]
    %v184 = vld [vmem:[%s2 + $0x20] sm:$0xff]
    %v185 = vld [vmem:[%s2 + $0x28] sm:$0xff]
    %v186 = vld [vmem:[%s2 + $0x30] sm:$0xff]
    %v187 = vld [vmem:[%s2 + $0x38] sm:$0xff]
    %v188 = vld [vmem:[%s2 + $0x80] sm:$0x1]
    %v189 = vlaneseq
    %v190 = vshrl.u32 %v189, 7
    %v191 = vsub.s32 0, %v190
    %v192 = vrot.slane %v188, %v191
    %vm193 = vcmask 261120
    %v195 = vsel %vm193, %v178, 0
    %v198 = vsel %vm193, %v179, 0
    %200 = vmatprep.subr.mxu0 0.0
    %201 = vmatpush1.msra.mxu0 0.0
    %202 = vmatprep.subr.mxu0 0.0
    %203 = vmatpush1.msra.mxu0 0.0
    %204 = vmatprep.subr.mxu0 0.0
    %205 = vmatpush1.msra.mxu0 0.0
    %206 = vmatprep.subr.mxu0 0.0
    %207 = vmatpush1.msra.mxu0 0.0
    %208 = vmatprep.subr.mxu0 0.0
    %209 = vmatpush1.msra.mxu0 0.0
    %210 = vmatprep.subr.mxu0 0.0
    %211 = vmatpush1.msra.mxu0 0.0
    %212 = vmatprep.subr.mxu0 0.0
    %213 = vmatpush1.msra.mxu0 0.0
    %214 = vmatprep.subr.mxu0 0.0
    %215 = vmatpush1.msra.mxu0 0.0
    %216 = vmatprep.subr.mxu0 0.0
    %217 = vmatpush1.msra.mxu0 0.0
    %218 = vmatprep.subr.mxu0 0.0
    %219 = vmatpush1.msra.mxu0 0.0
    %220 = vmatprep.subr.mxu0 0.0
    %221 = vmatpush1.msra.mxu0 0.0
    %222 = vmatprep.subr.mxu0 0.0
    %223 = vmatpush1.msra.mxu0 0.0
    %224 = vmatprep.subr.mxu0 0.0
    %225 = vmatpush1.msra.mxu0 %v183
    %226 = vmatprep.subr.mxu0 0.0
    %227 = vmatpush1.msra.mxu0 %v182
    %228 = vmatprep.subr.mxu0 0.0
    %229 = vmatpush1.msra.mxu0 %v181
    %230 = vmatprep.subr.mxu0 0.0
    %231 = vmatpush1.msra.mxu0 %v180
    %232 = vmatprep.subr.mxu0 0.0
    %233 = vmatpush2.msra.mxu0 0.0
    %234 = vmatprep.subr.mxu0 0.0
    %235 = vmatpush2.msra.mxu0 0.0
    %236 = vmatprep.subr.mxu0 0.0
    %237 = vmatpush2.msra.mxu0 0.0
    %238 = vmatprep.subr.mxu0 0.0
    %239 = vmatpush2.msra.mxu0 0.0
    %240 = vmatprep.subr.mxu0 0.0
    %241 = vmatpush2.msra.mxu0 0.0
    %242 = vmatprep.subr.mxu0 0.0
    %243 = vmatpush2.msra.mxu0 0.0
    %244 = vmatprep.subr.mxu0 0.0
    %245 = vmatpush2.msra.mxu0 0.0
    %246 = vmatprep.subr.mxu0 0.0
    %247 = vmatpush2.msra.mxu0 0.0
    %248 = vmatprep.subr.mxu0 0.0
    %249 = vmatpush2.msra.mxu0 0.0
    %250 = vmatprep.subr.mxu0 0.0
    %251 = vmatpush2.msra.mxu0 0.0
    %252 = vmatprep.subr.mxu0 0.0
    %253 = vmatpush2.msra.mxu0 0.0
    %254 = vmatprep.subr.mxu0 0.0
    %255 = vmatpush2.msra.mxu0 0.0
    %256 = vmatprep.subr.mxu0 0.0
    %257 = vmatpush2.msra.mxu0 0.0
    %258 = vmatprep.subr.mxu0 0.0
    %259 = vmatpush2.msra.mxu0 0.0
    %260 = vmatprep.subr.mxu0 0.0
    %261 = vmatpush2.msra.mxu0 0.0
    %262 = vmatprep.subr.mxu0 0.0
    %263 = vmatpush2.msra.mxu0 0.0
    %264 = vmatprep.mubr.f32.mxu0 0.0
    %265 = vmatmul.mubr.f32.gmra.mxu0 %v195
    %v266 = vpop.f32.mrf.mxu0
    %v267 = vadd.f32 %v192, %v266
    %v268 = vpop.f32.mrf.mxu0
    %269 = vmatprep.mubr.f32.mxu0 0.0
    %270 = vmatmul.mubr.f32.gmra.mxu0 %v198
    %v271 = vpop.f32.mrf.mxu0
    %v272 = vadd.f32 %v192, %v271
    %v273 = vpop.f32.mrf.mxu0
    %274 = vdwg.mxu0
    %v275 = vxor.u32 %v267, 2147483648
    %v276 = vmul.f32 %v275, 1.442695
    %v277 = vpow.pop %v276
    %v278 = vadd.f32 %v277, 1.0
    %v279 = vrcp.pop %v278
    %v280 = vmul.f32 1.0, %v279
    %v281 = vtanh.pop %v267
    %283 = vrot.lane.b32.xlu0 %v281, 64
    %v284 = vpop.permute.xlu0 %283
    %v286 = vmul.f32 %v280, %v284
    %v287 = vtanh.pop %v286
    %289 = vrot.lane.b32.xlu0 %v287, 96
    %v290 = vpop.permute.xlu0 %289
    %v292 = vmul.f32 %v280, %v290
    %294 = vrot.lane.b32.xlu0 %v292, 32
    %v295 = vpop.permute.xlu0 %294
    %v296 = vsel %vm193, %v295, 0
    %298 = vmatprep.subr.mxu0 0.0
    %299 = vmatpush1.msra.mxu0 0.0
    %300 = vmatprep.subr.mxu0 0.0
    %301 = vmatpush1.msra.mxu0 0.0
    %302 = vmatprep.subr.mxu0 0.0
    %303 = vmatpush1.msra.mxu0 0.0
    %304 = vmatprep.subr.mxu0 0.0
    %305 = vmatpush1.msra.mxu0 0.0
    %306 = vmatprep.subr.mxu0 0.0
    %307 = vmatpush1.msra.mxu0 0.0
    %308 = vmatprep.subr.mxu0 0.0
    %309 = vmatpush1.msra.mxu0 0.0
    %310 = vmatprep.subr.mxu0 0.0
    %311 = vmatpush1.msra.mxu0 0.0
    %312 = vmatprep.subr.mxu0 0.0
    %313 = vmatpush1.msra.mxu0 0.0
    %314 = vmatprep.subr.mxu0 0.0
    %315 = vmatpush1.msra.mxu0 0.0
    %316 = vmatprep.subr.mxu0 0.0
    %317 = vmatpush1.msra.mxu0 0.0
    %318 = vmatprep.subr.mxu0 0.0
    %319 = vmatpush1.msra.mxu0 0.0
    %320 = vmatprep.subr.mxu0 0.0
    %321 = vmatpush1.msra.mxu0 0.0
    %322 = vmatprep.subr.mxu0 0.0
    %323 = vmatpush1.msra.mxu0 %v187
    %324 = vmatprep.subr.mxu0 0.0
    %325 = vmatpush1.msra.mxu0 %v186
    %326 = vmatprep.subr.mxu0 0.0
    %327 = vmatpush1.msra.mxu0 %v185
    %328 = vmatprep.subr.mxu0 0.0
    %329 = vmatpush1.msra.mxu0 %v184
    %330 = vmatprep.subr.mxu0 0.0
    %331 = vmatpush2.msra.mxu0 0.0
    %332 = vmatprep.subr.mxu0 0.0
    %333 = vmatpush2.msra.mxu0 0.0
    %334 = vmatprep.subr.mxu0 0.0
    %335 = vmatpush2.msra.mxu0 0.0
    %336 = vmatprep.subr.mxu0 0.0
    %337 = vmatpush2.msra.mxu0 0.0
    %338 = vmatprep.subr.mxu0 0.0
    %339 = vmatpush2.msra.mxu0 0.0
    %340 = vmatprep.subr.mxu0 0.0
    %341 = vmatpush2.msra.mxu0 0.0
    %342 = vmatprep.subr.mxu0 0.0
    %343 = vmatpush2.msra.mxu0 0.0
    %344 = vmatprep.subr.mxu0 0.0
    %345 = vmatpush2.msra.mxu0 0.0
    %346 = vmatprep.subr.mxu0 0.0
    %347 = vmatpush2.msra.mxu0 0.0
    %348 = vmatprep.subr.mxu0 0.0
    %349 = vmatpush2.msra.mxu0 0.0
    %350 = vmatprep.subr.mxu0 0.0
    %351 = vmatpush2.msra.mxu0 0.0
    %352 = vmatprep.subr.mxu0 0.0
    %353 = vmatpush2.msra.mxu0 0.0
    %354 = vmatprep.subr.mxu0 0.0
    %355 = vmatpush2.msra.mxu0 0.0
    %356 = vmatprep.subr.mxu0 0.0
    %357 = vmatpush2.msra.mxu0 0.0
    %358 = vmatprep.subr.mxu0 0.0
    %359 = vmatpush2.msra.mxu0 0.0
    %360 = vmatprep.subr.mxu0 0.0
    %361 = vmatpush2.msra.mxu0 0.0
    %362 = vmatprep.mubr.f32.mxu0 0.0
    %363 = vmatmul.mubr.f32.gmra.mxu0 %v296
    %v364 = vpop.f32.mrf.mxu0
    %v365 = vadd.f32 0.0, %v364
    %v366 = vpop.f32.mrf.mxu0
    %367 = vdwg.mxu0
    %v369 = vrot.slane %v365, 6
    %v371 = vadd.f32 %v267, %v369
    %v372 = vxor.u32 %v371, 2147483648
    %v373 = vmul.f32 %v372, 1.442695
    %v374 = vpow.pop %v373
    %v375 = vadd.f32 %v374, 1.0
    %v376 = vrcp.pop %v375
    %v377 = vmul.f32 1.0, %v376
    %v378 = vtanh.pop %v371
    %v380 = vrot.slane %v286, 6
    %381 = vrot.lane.b32.xlu0 %v380, 32
    %v382 = vpop.permute.xlu0 %381
    %v384 = vmul.f32 %v377, %v382
    %386 = vrot.lane.b32.xlu0 %v378, 64
    %v387 = vpop.permute.xlu0 %386
    %v389 = vmul.f32 %v377, %v387
    %391 = vrot.lane.b32.xlu0 %v389, 32
    %v392 = vpop.permute.xlu0 %391
    %v394 = vadd.f32 %v384, %v392
    %v395 = vtanh.pop %v394
    %397 = vrot.lane.b32.xlu0 %v395, 64
    %v398 = vpop.permute.xlu0 %397
    %v400 = vmul.f32 %v377, %v398
    %v402 = vrot.slane %v400, 2
    %403 = vrot.lane.b32.xlu0 %v402, 32
    %v404 = vpop.permute.xlu0 %403
    %v405 = vsel %vm193, %v404, 0
    %407 = vmatprep.subr.mxu0 0.0
    %408 = vmatpush1.msra.mxu0 0.0
    %409 = vmatprep.subr.mxu0 0.0
    %410 = vmatpush1.msra.mxu0 0.0
    %411 = vmatprep.subr.mxu0 0.0
    %412 = vmatpush1.msra.mxu0 0.0
    %413 = vmatprep.subr.mxu0 0.0
    %414 = vmatpush1.msra.mxu0 0.0
    %415 = vmatprep.subr.mxu0 0.0
    %416 = vmatpush1.msra.mxu0 0.0
    %417 = vmatprep.subr.mxu0 0.0
    %418 = vmatpush1.msra.mxu0 0.0
    %419 = vmatprep.subr.mxu0 0.0
    %420 = vmatpush1.msra.mxu0 0.0
    %421 = vmatprep.subr.mxu0 0.0
    %422 = vmatpush1.msra.mxu0 0.0
    %423 = vmatprep.subr.mxu0 0.0
    %424 = vmatpush1.msra.mxu0 0.0
    %425 = vmatprep.subr.mxu0 0.0
    %426 = vmatpush1.msra.mxu0 0.0
    %427 = vmatprep.subr.mxu0 0.0
    %428 = vmatpush1.msra.mxu0 0.0
    %429 = vmatprep.subr.mxu0 0.0
    %430 = vmatpush1.msra.mxu0 0.0
    %431 = vmatprep.subr.mxu0 0.0
    %432 = vmatpush1.msra.mxu0 %v187
    %433 = vmatprep.subr.mxu0 0.0
    %434 = vmatpush1.msra.mxu0 %v186
    %435 = vmatprep.subr.mxu0 0.0
    %436 = vmatpush1.msra.mxu0 %v185
    %437 = vmatprep.subr.mxu0 0.0
    %438 = vmatpush1.msra.mxu0 %v184
    %439 = vmatprep.subr.mxu0 0.0
    %440 = vmatpush2.msra.mxu0 0.0
    %441 = vmatprep.subr.mxu0 0.0
    %442 = vmatpush2.msra.mxu0 0.0
    %443 = vmatprep.subr.mxu0 0.0
    %444 = vmatpush2.msra.mxu0 0.0
    %445 = vmatprep.subr.mxu0 0.0
    %446 = vmatpush2.msra.mxu0 0.0
    %447 = vmatprep.subr.mxu0 0.0
    %448 = vmatpush2.msra.mxu0 0.0
    %449 = vmatprep.subr.mxu0 0.0
    %450 = vmatpush2.msra.mxu0 0.0
    %451 = vmatprep.subr.mxu0 0.0
    %452 = vmatpush2.msra.mxu0 0.0
    %453 = vmatprep.subr.mxu0 0.0
    %454 = vmatpush2.msra.mxu0 0.0
    %455 = vmatprep.subr.mxu0 0.0
    %456 = vmatpush2.msra.mxu0 0.0
    %457 = vmatprep.subr.mxu0 0.0
    %458 = vmatpush2.msra.mxu0 0.0
    %459 = vmatprep.subr.mxu0 0.0
    %460 = vmatpush2.msra.mxu0 0.0
    %461 = vmatprep.subr.mxu0 0.0
    %462 = vmatpush2.msra.mxu0 0.0
    %463 = vmatprep.subr.mxu0 0.0
    %464 = vmatpush2.msra.mxu0 0.0
    %465 = vmatprep.subr.mxu0 0.0
    %466 = vmatpush2.msra.mxu0 0.0
    %467 = vmatprep.subr.mxu0 0.0
    %468 = vmatpush2.msra.mxu0 0.0
    %469 = vmatprep.subr.mxu0 0.0
    %470 = vmatpush2.msra.mxu0 0.0
    %471 = vmatprep.mubr.f32.mxu0 0.0
    %472 = vmatmul.mubr.f32.gmra.mxu0 %v405
    %v473 = vpop.f32.mrf.mxu0
    %v474 = vadd.f32 0.0, %v473
    %v475 = vpop.f32.mrf.mxu0
    %476 = vdwg.mxu0
    %v478 = vrot.slane %v474, 4
    %v480 = vadd.f32 %v267, %v478
    %v481 = vxor.u32 %v480, 2147483648
    %v482 = vmul.f32 %v481, 1.442695
    %v483 = vpow.pop %v482
    %v484 = vadd.f32 %v483, 1.0
    %v485 = vrcp.pop %v484
    %v486 = vmul.f32 1.0, %v485
    %v487 = vtanh.pop %v480
    %v489 = vrot.slane %v394, 6
    %v491 = vmul.f32 %v486, %v489
    %493 = vrot.lane.b32.xlu0 %v487, 64
    %v494 = vpop.permute.xlu0 %493
    %v496 = vmul.f32 %v486, %v494
    %498 = vrot.lane.b32.xlu0 %v496, 32
    %v499 = vpop.permute.xlu0 %498
    %v501 = vadd.f32 %v491, %v499
    %v502 = vtanh.pop %v501
    %504 = vrot.lane.b32.xlu0 %v502, 64
    %v505 = vpop.permute.xlu0 %504
    %v507 = vmul.f32 %v486, %v505
    %v509 = vrot.slane %v507, 4
    %510 = vrot.lane.b32.xlu0 %v509, 32
    %v511 = vpop.permute.xlu0 %510
    %v512 = vsel %vm193, %v511, 0
    %514 = vmatprep.subr.mxu0 0.0
    %515 = vmatpush1.msra.mxu0 0.0
    %516 = vmatprep.subr.mxu0 0.0
    %517 = vmatpush1.msra.mxu0 0.0
    %518 = vmatprep.subr.mxu0 0.0
    %519 = vmatpush1.msra.mxu0 0.0
    %520 = vmatprep.subr.mxu0 0.0
    %521 = vmatpush1.msra.mxu0 0.0
    %522 = vmatprep.subr.mxu0 0.0
    %523 = vmatpush1.msra.mxu0 0.0
    %524 = vmatprep.subr.mxu0 0.0
    %525 = vmatpush1.msra.mxu0 0.0
    %526 = vmatprep.subr.mxu0 0.0
    %527 = vmatpush1.msra.mxu0 0.0
    %528 = vmatprep.subr.mxu0 0.0
    %529 = vmatpush1.msra.mxu0 0.0
    %530 = vmatprep.subr.mxu0 0.0
    %531 = vmatpush1.msra.mxu0 0.0
    %532 = vmatprep.subr.mxu0 0.0
    %533 = vmatpush1.msra.mxu0 0.0
    %534 = vmatprep.subr.mxu0 0.0
    %535 = vmatpush1.msra.mxu0 0.0
    %536 = vmatprep.subr.mxu0 0.0
    %537 = vmatpush1.msra.mxu0 0.0
    %538 = vmatprep.subr.mxu0 0.0
    %539 = vmatpush1.msra.mxu0 %v187
    %540 = vmatprep.subr.mxu0 0.0
    %541 = vmatpush1.msra.mxu0 %v186
    %542 = vmatprep.subr.mxu0 0.0
    %543 = vmatpush1.msra.mxu0 %v185
    %544 = vmatprep.subr.mxu0 0.0
    %545 = vmatpush1.msra.mxu0 %v184
    %546 = vmatprep.subr.mxu0 0.0
    %547 = vmatpush2.msra.mxu0 0.0
    %548 = vmatprep.subr.mxu0 0.0
    %549 = vmatpush2.msra.mxu0 0.0
    %550 = vmatprep.subr.mxu0 0.0
    %551 = vmatpush2.msra.mxu0 0.0
    %552 = vmatprep.subr.mxu0 0.0
    %553 = vmatpush2.msra.mxu0 0.0
    %554 = vmatprep.subr.mxu0 0.0
    %555 = vmatpush2.msra.mxu0 0.0
    %556 = vmatprep.subr.mxu0 0.0
    %557 = vmatpush2.msra.mxu0 0.0
    %558 = vmatprep.subr.mxu0 0.0
    %559 = vmatpush2.msra.mxu0 0.0
    %560 = vmatprep.subr.mxu0 0.0
    %561 = vmatpush2.msra.mxu0 0.0
    %562 = vmatprep.subr.mxu0 0.0
    %563 = vmatpush2.msra.mxu0 0.0
    %564 = vmatprep.subr.mxu0 0.0
    %565 = vmatpush2.msra.mxu0 0.0
    %566 = vmatprep.subr.mxu0 0.0
    %567 = vmatpush2.msra.mxu0 0.0
    %568 = vmatprep.subr.mxu0 0.0
    %569 = vmatpush2.msra.mxu0 0.0
    %570 = vmatprep.subr.mxu0 0.0
    %571 = vmatpush2.msra.mxu0 0.0
    %572 = vmatprep.subr.mxu0 0.0
    %573 = vmatpush2.msra.mxu0 0.0
    %574 = vmatprep.subr.mxu0 0.0
    %575 = vmatpush2.msra.mxu0 0.0
    %576 = vmatprep.subr.mxu0 0.0
    %577 = vmatpush2.msra.mxu0 0.0
    %578 = vmatprep.mubr.f32.mxu0 0.0
    %579 = vmatmul.mubr.f32.gmra.mxu0 %v512
    %v580 = vpop.f32.mrf.mxu0
    %v581 = vadd.f32 0.0, %v580
    %v582 = vpop.f32.mrf.mxu0
    %583 = vdwg.mxu0
    %v585 = vrot.slane %v581, 2
    %v587 = vadd.f32 %v267, %v585
    %v588 = vxor.u32 %v587, 2147483648
    %v589 = vmul.f32 %v588, 1.442695
    %v590 = vpow.pop %v589
    %v591 = vadd.f32 %v590, 1.0
    %v592 = vrcp.pop %v591
    %v593 = vmul.f32 1.0, %v592
    %v594 = vtanh.pop %v587
    %v596 = vrot.slane %v501, 6
    %v598 = vmul.f32 %v593, %v596
    %600 = vrot.lane.b32.xlu0 %v594, 64
    %v601 = vpop.permute.xlu0 %600
    %v603 = vmul.f32 %v593, %v601
    %605 = vrot.lane.b32.xlu0 %v603, 32
    %v606 = vpop.permute.xlu0 %605
    %v608 = vadd.f32 %v598, %v606
    %v609 = vtanh.pop %v608
    %611 = vrot.lane.b32.xlu0 %v609, 64
    %v612 = vpop.permute.xlu0 %611
    %v614 = vmul.f32 %v593, %v612
    %v616 = vrot.slane %v614, 6
    %617 = vrot.lane.b32.xlu0 %v616, 32
    %v618 = vpop.permute.xlu0 %617
    %v619 = vsel %vm193, %v618, 0
    %621 = vmatprep.subr.mxu0 0.0
    %622 = vmatpush1.msra.mxu0 0.0
    %623 = vmatprep.subr.mxu0 0.0
    %624 = vmatpush1.msra.mxu0 0.0
    %625 = vmatprep.subr.mxu0 0.0
    %626 = vmatpush1.msra.mxu0 0.0
    %627 = vmatprep.subr.mxu0 0.0
    %628 = vmatpush1.msra.mxu0 0.0
    %629 = vmatprep.subr.mxu0 0.0
    %630 = vmatpush1.msra.mxu0 0.0
    %631 = vmatprep.subr.mxu0 0.0
    %632 = vmatpush1.msra.mxu0 0.0
    %633 = vmatprep.subr.mxu0 0.0
    %634 = vmatpush1.msra.mxu0 0.0
    %635 = vmatprep.subr.mxu0 0.0
    %636 = vmatpush1.msra.mxu0 0.0
    %637 = vmatprep.subr.mxu0 0.0
    %638 = vmatpush1.msra.mxu0 0.0
    %639 = vmatprep.subr.mxu0 0.0
    %640 = vmatpush1.msra.mxu0 0.0
    %641 = vmatprep.subr.mxu0 0.0
    %642 = vmatpush1.msra.mxu0 0.0
    %643 = vmatprep.subr.mxu0 0.0
    %644 = vmatpush1.msra.mxu0 0.0
    %645 = vmatprep.subr.mxu0 0.0
    %646 = vmatpush1.msra.mxu0 %v187
    %647 = vmatprep.subr.mxu0 0.0
    %648 = vmatpush1.msra.mxu0 %v186
    %649 = vmatprep.subr.mxu0 0.0
    %650 = vmatpush1.msra.mxu0 %v185
    %651 = vmatprep.subr.mxu0 0.0
    %652 = vmatpush1.msra.mxu0 %v184
    %653 = vmatprep.subr.mxu0 0.0
    %654 = vmatpush2.msra.mxu0 0.0
    %655 = vmatprep.subr.mxu0 0.0
    %656 = vmatpush2.msra.mxu0 0.0
    %657 = vmatprep.subr.mxu0 0.0
    %658 = vmatpush2.msra.mxu0 0.0
    %659 = vmatprep.subr.mxu0 0.0
    %660 = vmatpush2.msra.mxu0 0.0
    %661 = vmatprep.subr.mxu0 0.0
    %662 = vmatpush2.msra.mxu0 0.0
    %663 = vmatprep.subr.mxu0 0.0
    %664 = vmatpush2.msra.mxu0 0.0
    %665 = vmatprep.subr.mxu0 0.0
    %666 = vmatpush2.msra.mxu0 0.0
    %667 = vmatprep.subr.mxu0 0.0
    %668 = vmatpush2.msra.mxu0 0.0
    %669 = vmatprep.subr.mxu0 0.0
    %670 = vmatpush2.msra.mxu0 0.0
    %671 = vmatprep.subr.mxu0 0.0
    %672 = vmatpush2.msra.mxu0 0.0
    %673 = vmatprep.subr.mxu0 0.0
    %674 = vmatpush2.msra.mxu0 0.0
    %675 = vmatprep.subr.mxu0 0.0
    %676 = vmatpush2.msra.mxu0 0.0
    %677 = vmatprep.subr.mxu0 0.0
    %678 = vmatpush2.msra.mxu0 0.0
    %679 = vmatprep.subr.mxu0 0.0
    %680 = vmatpush2.msra.mxu0 0.0
    %681 = vmatprep.subr.mxu0 0.0
    %682 = vmatpush2.msra.mxu0 0.0
    %683 = vmatprep.subr.mxu0 0.0
    %684 = vmatpush2.msra.mxu0 0.0
    %685 = vmatprep.mubr.f32.mxu0 0.0
    %686 = vmatmul.mubr.f32.gmra.mxu0 %v619
    %v687 = vpop.f32.mrf.mxu0
    %v688 = vadd.f32 0.0, %v687
    %v689 = vpop.f32.mrf.mxu0
    %690 = vdwg.mxu0
    %v691 = vadd.f32 %v272, %v688
    %v692 = vxor.u32 %v691, 2147483648
    %v693 = vmul.f32 %v692, 1.442695
    %v694 = vpow.pop %v693
    %v695 = vadd.f32 %v694, 1.0
    %v696 = vrcp.pop %v695
    %v697 = vmul.f32 1.0, %v696
    %v698 = vtanh.pop %v691
    %v700 = vrot.slane %v608, 6
    %v702 = vmul.f32 %v697, %v700
    %704 = vrot.lane.b32.xlu0 %v698, 64
    %v705 = vpop.permute.xlu0 %704
    %v707 = vmul.f32 %v697, %v705
    %709 = vrot.lane.b32.xlu0 %v707, 32
    %v710 = vpop.permute.xlu0 %709
    %v712 = vadd.f32 %v702, %v710
    %v713 = vtanh.pop %v712
    %715 = vrot.lane.b32.xlu0 %v713, 64
    %v716 = vpop.permute.xlu0 %715
    %v718 = vmul.f32 %v697, %v716
    %720 = vrot.lane.b32.xlu0 %v718, 32
    %v721 = vpop.permute.xlu0 %720
    %v722 = vsel %vm193, %v721, 0
    %724 = vmatprep.subr.mxu0 0.0
    %725 = vmatpush1.msra.mxu0 0.0
    %726 = vmatprep.subr.mxu0 0.0
    %727 = vmatpush1.msra.mxu0 0.0
    %728 = vmatprep.subr.mxu0 0.0
    %729 = vmatpush1.msra.mxu0 0.0
    %730 = vmatprep.subr.mxu0 0.0
    %731 = vmatpush1.msra.mxu0 0.0
    %732 = vmatprep.subr.mxu0 0.0
    %733 = vmatpush1.msra.mxu0 0.0
    %734 = vmatprep.subr.mxu0 0.0
    %735 = vmatpush1.msra.mxu0 0.0
    %736 = vmatprep.subr.mxu0 0.0
    %737 = vmatpush1.msra.mxu0 0.0
    %738 = vmatprep.subr.mxu0 0.0
    %739 = vmatpush1.msra.mxu0 0.0
    %740 = vmatprep.subr.mxu0 0.0
    %741 = vmatpush1.msra.mxu0 0.0
    %742 = vmatprep.subr.mxu0 0.0
    %743 = vmatpush1.msra.mxu0 0.0
    %744 = vmatprep.subr.mxu0 0.0
    %745 = vmatpush1.msra.mxu0 0.0
    %746 = vmatprep.subr.mxu0 0.0
    %747 = vmatpush1.msra.mxu0 0.0
    %748 = vmatprep.subr.mxu0 0.0
    %749 = vmatpush1.msra.mxu0 %v187
    %750 = vmatprep.subr.mxu0 0.0
    %751 = vmatpush1.msra.mxu0 %v186
    %752 = vmatprep.subr.mxu0 0.0
    %753 = vmatpush1.msra.mxu0 %v185
    %754 = vmatprep.subr.mxu0 0.0
    %755 = vmatpush1.msra.mxu0 %v184
    %756 = vmatprep.subr.mxu0 0.0
    %757 = vmatpush2.msra.mxu0 0.0
    %758 = vmatprep.subr.mxu0 0.0
    %759 = vmatpush2.msra.mxu0 0.0
    %760 = vmatprep.subr.mxu0 0.0
    %761 = vmatpush2.msra.mxu0 0.0
    %762 = vmatprep.subr.mxu0 0.0
    %763 = vmatpush2.msra.mxu0 0.0
    %764 = vmatprep.subr.mxu0 0.0
    %765 = vmatpush2.msra.mxu0 0.0
    %766 = vmatprep.subr.mxu0 0.0
    %767 = vmatpush2.msra.mxu0 0.0
    %768 = vmatprep.subr.mxu0 0.0
    %769 = vmatpush2.msra.mxu0 0.0
    %770 = vmatprep.subr.mxu0 0.0
    %771 = vmatpush2.msra.mxu0 0.0
    %772 = vmatprep.subr.mxu0 0.0
    %773 = vmatpush2.msra.mxu0 0.0
    %774 = vmatprep.subr.mxu0 0.0
    %775 = vmatpush2.msra.mxu0 0.0
    %776 = vmatprep.subr.mxu0 0.0
    %777 = vmatpush2.msra.mxu0 0.0
    %778 = vmatprep.subr.mxu0 0.0
    %779 = vmatpush2.msra.mxu0 0.0
    %780 = vmatprep.subr.mxu0 0.0
    %781 = vmatpush2.msra.mxu0 0.0
    %782 = vmatprep.subr.mxu0 0.0
    %783 = vmatpush2.msra.mxu0 0.0
    %784 = vmatprep.subr.mxu0 0.0
    %785 = vmatpush2.msra.mxu0 0.0
    %786 = vmatprep.subr.mxu0 0.0
    %787 = vmatpush2.msra.mxu0 0.0
    %788 = vmatprep.mubr.f32.mxu0 0.0
    %789 = vmatmul.mubr.f32.gmra.mxu0 %v722
    %v790 = vpop.f32.mrf.mxu0
    %v791 = vadd.f32 0.0, %v790
    %v792 = vpop.f32.mrf.mxu0
    %793 = vdwg.mxu0
    %v795 = vrot.slane %v791, 6
    %v797 = vadd.f32 %v272, %v795
    %v798 = vxor.u32 %v797, 2147483648
    %v799 = vmul.f32 %v798, 1.442695
    %v800 = vpow.pop %v799
    %v801 = vadd.f32 %v800, 1.0
    %v802 = vrcp.pop %v801
    %v803 = vmul.f32 1.0, %v802
    %v804 = vtanh.pop %v797
    %v806 = vrot.slane %v712, 6
    %v808 = vmul.f32 %v803, %v806
    %810 = vrot.lane.b32.xlu0 %v804, 64
    %v811 = vpop.permute.xlu0 %810
    %v813 = vmul.f32 %v803, %v811
    %815 = vrot.lane.b32.xlu0 %v813, 32
    %v816 = vpop.permute.xlu0 %815
    %v818 = vadd.f32 %v808, %v816
    %v819 = vtanh.pop %v818
    %821 = vrot.lane.b32.xlu0 %v819, 64
    %v822 = vpop.permute.xlu0 %821
    %v824 = vmul.f32 %v803, %v822
    %v826 = vrot.slane %v824, 2
    %827 = vrot.lane.b32.xlu0 %v826, 32
    %v828 = vpop.permute.xlu0 %827
    %v829 = vsel %vm193, %v828, 0
    %831 = vmatprep.subr.mxu0 0.0
    %832 = vmatpush1.msra.mxu0 0.0
    %833 = vmatprep.subr.mxu0 0.0
    %834 = vmatpush1.msra.mxu0 0.0
    %835 = vmatprep.subr.mxu0 0.0
    %836 = vmatpush1.msra.mxu0 0.0
    %837 = vmatprep.subr.mxu0 0.0
    %838 = vmatpush1.msra.mxu0 0.0
    %839 = vmatprep.subr.mxu0 0.0
    %840 = vmatpush1.msra.mxu0 0.0
    %841 = vmatprep.subr.mxu0 0.0
    %842 = vmatpush1.msra.mxu0 0.0
    %843 = vmatprep.subr.mxu0 0.0
    %844 = vmatpush1.msra.mxu0 0.0
    %845 = vmatprep.subr.mxu0 0.0
    %846 = vmatpush1.msra.mxu0 0.0
    %847 = vmatprep.subr.mxu0 0.0
    %848 = vmatpush1.msra.mxu0 0.0
    %849 = vmatprep.subr.mxu0 0.0
    %850 = vmatpush1.msra.mxu0 0.0
    %851 = vmatprep.subr.mxu0 0.0
    %852 = vmatpush1.msra.mxu0 0.0
    %853 = vmatprep.subr.mxu0 0.0
    %854 = vmatpush1.msra.mxu0 0.0
    %855 = vmatprep.subr.mxu0 0.0
    %856 = vmatpush1.msra.mxu0 %v187
    %857 = vmatprep.subr.mxu0 0.0
    %858 = vmatpush1.msra.mxu0 %v186
    %859 = vmatprep.subr.mxu0 0.0
    %860 = vmatpush1.msra.mxu0 %v185
    %861 = vmatprep.subr.mxu0 0.0
    %862 = vmatpush1.msra.mxu0 %v184
    %863 = vmatprep.subr.mxu0 0.0
    %864 = vmatpush2.msra.mxu0 0.0
    %865 = vmatprep.subr.mxu0 0.0
    %866 = vmatpush2.msra.mxu0 0.0
    %867 = vmatprep.subr.mxu0 0.0
    %868 = vmatpush2.msra.mxu0 0.0
    %869 = vmatprep.subr.mxu0 0.0
    %870 = vmatpush2.msra.mxu0 0.0
    %871 = vmatprep.subr.mxu0 0.0
    %872 = vmatpush2.msra.mxu0 0.0
    %873 = vmatprep.subr.mxu0 0.0
    %874 = vmatpush2.msra.mxu0 0.0
    %875 = vmatprep.subr.mxu0 0.0
    %876 = vmatpush2.msra.mxu0 0.0
    %877 = vmatprep.subr.mxu0 0.0
    %878 = vmatpush2.msra.mxu0 0.0
    %879 = vmatprep.subr.mxu0 0.0
    %880 = vmatpush2.msra.mxu0 0.0
    %881 = vmatprep.subr.mxu0 0.0
    %882 = vmatpush2.msra.mxu0 0.0
    %883 = vmatprep.subr.mxu0 0.0
    %884 = vmatpush2.msra.mxu0 0.0
    %885 = vmatprep.subr.mxu0 0.0
    %886 = vmatpush2.msra.mxu0 0.0
    %887 = vmatprep.subr.mxu0 0.0
    %888 = vmatpush2.msra.mxu0 0.0
    %889 = vmatprep.subr.mxu0 0.0
    %890 = vmatpush2.msra.mxu0 0.0
    %891 = vmatprep.subr.mxu0 0.0
    %892 = vmatpush2.msra.mxu0 0.0
    %893 = vmatprep.subr.mxu0 0.0
    %894 = vmatpush2.msra.mxu0 0.0
    %895 = vmatprep.mubr.f32.mxu0 0.0
    %896 = vmatmul.mubr.f32.gmra.mxu0 %v829
    %v897 = vpop.f32.mrf.mxu0
    %v898 = vadd.f32 0.0, %v897
    %v899 = vpop.f32.mrf.mxu0
    %900 = vdwg.mxu0
    %v902 = vrot.slane %v898, 4
    %v904 = vadd.f32 %v272, %v902
    %v905 = vxor.u32 %v904, 2147483648
    %v906 = vmul.f32 %v905, 1.442695
    %v907 = vpow.pop %v906
    %v908 = vadd.f32 %v907, 1.0
    %v909 = vrcp.pop %v908
    %v910 = vmul.f32 1.0, %v909
    %v911 = vtanh.pop %v904
    %v913 = vrot.slane %v818, 6
    %v915 = vmul.f32 %v910, %v913
    %917 = vrot.lane.b32.xlu0 %v911, 64
    %v918 = vpop.permute.xlu0 %917
    %v920 = vmul.f32 %v910, %v918
    %922 = vrot.lane.b32.xlu0 %v920, 32
    %v923 = vpop.permute.xlu0 %922
    %v925 = vadd.f32 %v915, %v923
    %v926 = vtanh.pop %v925
    %928 = vrot.lane.b32.xlu0 %v926, 64
    %v929 = vpop.permute.xlu0 %928
    %v931 = vmul.f32 %v910, %v929
    %v933 = vrot.slane %v931, 4
    %934 = vrot.lane.b32.xlu0 %v933, 32
    %v935 = vpop.permute.xlu0 %934
    %v936 = vsel %vm193, %v935, 0
    %938 = vmatprep.subr.mxu0 0.0
    %939 = vmatpush1.msra.mxu0 0.0
    %940 = vmatprep.subr.mxu0 0.0
    %941 = vmatpush1.msra.mxu0 0.0
    %942 = vmatprep.subr.mxu0 0.0
    %943 = vmatpush1.msra.mxu0 0.0
    %944 = vmatprep.subr.mxu0 0.0
    %945 = vmatpush1.msra.mxu0 0.0
    %946 = vmatprep.subr.mxu0 0.0
    %947 = vmatpush1.msra.mxu0 0.0
    %948 = vmatprep.subr.mxu0 0.0
    %949 = vmatpush1.msra.mxu0 0.0
    %950 = vmatprep.subr.mxu0 0.0
    %951 = vmatpush1.msra.mxu0 0.0
    %952 = vmatprep.subr.mxu0 0.0
    %953 = vmatpush1.msra.mxu0 0.0
    %954 = vmatprep.subr.mxu0 0.0
    %955 = vmatpush1.msra.mxu0 0.0
    %956 = vmatprep.subr.mxu0 0.0
    %957 = vmatpush1.msra.mxu0 0.0
    %958 = vmatprep.subr.mxu0 0.0
    %959 = vmatpush1.msra.mxu0 0.0
    %960 = vmatprep.subr.mxu0 0.0
    %961 = vmatpush1.msra.mxu0 0.0
    %962 = vmatprep.subr.mxu0 0.0
    %963 = vmatpush1.msra.mxu0 %v187
    %964 = vmatprep.subr.mxu0 0.0
    %965 = vmatpush1.msra.mxu0 %v186
    %966 = vmatprep.subr.mxu0 0.0
    %967 = vmatpush1.msra.mxu0 %v185
    %968 = vmatprep.subr.mxu0 0.0
    %969 = vmatpush1.msra.mxu0 %v184
    %970 = vmatprep.subr.mxu0 0.0
    %971 = vmatpush2.msra.mxu0 0.0
    %972 = vmatprep.subr.mxu0 0.0
    %973 = vmatpush2.msra.mxu0 0.0
    %974 = vmatprep.subr.mxu0 0.0
    %975 = vmatpush2.msra.mxu0 0.0
    %976 = vmatprep.subr.mxu0 0.0
    %977 = vmatpush2.msra.mxu0 0.0
    %978 = vmatprep.subr.mxu0 0.0
    %979 = vmatpush2.msra.mxu0 0.0
    %980 = vmatprep.subr.mxu0 0.0
    %981 = vmatpush2.msra.mxu0 0.0
    %982 = vmatprep.subr.mxu0 0.0
    %983 = vmatpush2.msra.mxu0 0.0
    %984 = vmatprep.subr.mxu0 0.0
    %985 = vmatpush2.msra.mxu0 0.0
    %986 = vmatprep.subr.mxu0 0.0
    %987 = vmatpush2.msra.mxu0 0.0
    %988 = vmatprep.subr.mxu0 0.0
    %989 = vmatpush2.msra.mxu0 0.0
    %990 = vmatprep.subr.mxu0 0.0
    %991 = vmatpush2.msra.mxu0 0.0
    %992 = vmatprep.subr.mxu0 0.0
    %993 = vmatpush2.msra.mxu0 0.0
    %994 = vmatprep.subr.mxu0 0.0
    %995 = vmatpush2.msra.mxu0 0.0
    %996 = vmatprep.subr.mxu0 0.0
    %997 = vmatpush2.msra.mxu0 0.0
    %998 = vmatprep.subr.mxu0 0.0
    %999 = vmatpush2.msra.mxu0 0.0
    %1000 = vmatprep.subr.mxu0 0.0
    %1001 = vmatpush2.msra.mxu0 0.0
    %1002 = vmatprep.mubr.f32.mxu0 0.0
    %1003 = vmatmul.mubr.f32.gmra.mxu0 %v936
    %v1004 = vpop.f32.mrf.mxu0
    %v1005 = vadd.f32 0.0, %v1004
    %v1006 = vpop.f32.mrf.mxu0
    %1007 = vdwg.mxu0
    %v1009 = vrot.slane %v1005, 2
    %v1011 = vadd.f32 %v272, %v1009
    %v1012 = vxor.u32 %v1011, 2147483648
    %v1013 = vmul.f32 %v1012, 1.442695
    %v1014 = vpow.pop %v1013
    %v1015 = vadd.f32 %v1014, 1.0
    %v1016 = vrcp.pop %v1015
    %v1017 = vmul.f32 1.0, %v1016
    %v1018 = vtanh.pop %v1011
    %v1020 = vrot.slane %v925, 6
    %v1022 = vmul.f32 %v1017, %v1020
    %1024 = vrot.lane.b32.xlu0 %v1018, 64
    %v1025 = vpop.permute.xlu0 %1024
    %v1027 = vmul.f32 %v1017, %v1025
    %1029 = vrot.lane.b32.xlu0 %v1027, 32
    %v1030 = vpop.permute.xlu0 %1029
    %v1032 = vadd.f32 %v1022, %v1030
    %v1033 = vtanh.pop %v1032
    %1035 = vrot.lane.b32.xlu0 %v1033, 64
    %v1036 = vpop.permute.xlu0 %1035
    %v1038 = vmul.f32 %v1017, %v1036
    %v1039 = vsel %vm56, %v292, %v400
    %v1040 = vsel %vm60, %v1039, %v507
    %v1041 = vsel %vm64, %v1040, %v614
    %v1042 = vsel %vm56, %v718, %v824
    %v1043 = vsel %vm60, %v1042, %v931
    %v1044 = vsel %vm64, %v1043, %v1038
    %v1045 = vld [vmem:[%s2 + $0x40] sm:$0xff]
    %v1046 = vld [vmem:[%s2 + $0x48] sm:$0xff]
    %v1047 = vld [vmem:[%s2 + $0x50] sm:$0xff]
    %v1048 = vld [vmem:[%s2 + $0x58] sm:$0xff]
    %v1049 = vld [vmem:[%s2 + $0x60] sm:$0xff]
    %v1050 = vld [vmem:[%s2 + $0x68] sm:$0xff]
    %v1051 = vld [vmem:[%s2 + $0x70] sm:$0xff]
    %v1052 = vld [vmem:[%s2 + $0x78] sm:$0xff]
    %v1053 = vld [vmem:[%s2 + $0x81] sm:$0x1]
    %v1054 = vlaneseq
    %v1055 = vshrl.u32 %v1054, 7
    %v1056 = vsub.s32 0, %v1055
    %v1057 = vrot.slane %v1053, %v1056
    %1060 = vrot.lane.b32.xlu0 %v1041, 32
    %v1061 = vpop.permute.xlu0 %1060
    %1062 = vrot.lane.b32.xlu0 %v1044, 32
    %v1063 = vpop.permute.xlu0 %1062
    %v1064 = vsel %vm193, %v1061, 0
    %v1066 = vsel %vm193, %v1063, 0
    %1068 = vmatprep.subr.mxu0 0.0
    %1069 = vmatpush1.msra.mxu0 0.0
    %1070 = vmatprep.subr.mxu0 0.0
    %1071 = vmatpush1.msra.mxu0 0.0
    %1072 = vmatprep.subr.mxu0 0.0
    %1073 = vmatpush1.msra.mxu0 0.0
    %1074 = vmatprep.subr.mxu0 0.0
    %1075 = vmatpush1.msra.mxu0 0.0
    %1076 = vmatprep.subr.mxu0 0.0
    %1077 = vmatpush1.msra.mxu0 0.0
    %1078 = vmatprep.subr.mxu0 0.0
    %1079 = vmatpush1.msra.mxu0 0.0
    %1080 = vmatprep.subr.mxu0 0.0
    %1081 = vmatpush1.msra.mxu0 0.0
    %1082 = vmatprep.subr.mxu0 0.0
    %1083 = vmatpush1.msra.mxu0 0.0
    %1084 = vmatprep.subr.mxu0 0.0
    %1085 = vmatpush1.msra.mxu0 0.0
    %1086 = vmatprep.subr.mxu0 0.0
    %1087 = vmatpush1.msra.mxu0 0.0
    %1088 = vmatprep.subr.mxu0 0.0
    %1089 = vmatpush1.msra.mxu0 0.0
    %1090 = vmatprep.subr.mxu0 0.0
    %1091 = vmatpush1.msra.mxu0 0.0
    %1092 = vmatprep.subr.mxu0 0.0
    %1093 = vmatpush1.msra.mxu0 %v1048
    %1094 = vmatprep.subr.mxu0 0.0
    %1095 = vmatpush1.msra.mxu0 %v1047
    %1096 = vmatprep.subr.mxu0 0.0
    %1097 = vmatpush1.msra.mxu0 %v1046
    %1098 = vmatprep.subr.mxu0 0.0
    %1099 = vmatpush1.msra.mxu0 %v1045
    %1100 = vmatprep.subr.mxu0 0.0
    %1101 = vmatpush2.msra.mxu0 0.0
    %1102 = vmatprep.subr.mxu0 0.0
    %1103 = vmatpush2.msra.mxu0 0.0
    %1104 = vmatprep.subr.mxu0 0.0
    %1105 = vmatpush2.msra.mxu0 0.0
    %1106 = vmatprep.subr.mxu0 0.0
    %1107 = vmatpush2.msra.mxu0 0.0
    %1108 = vmatprep.subr.mxu0 0.0
    %1109 = vmatpush2.msra.mxu0 0.0
    %1110 = vmatprep.subr.mxu0 0.0
    %1111 = vmatpush2.msra.mxu0 0.0
    %1112 = vmatprep.subr.mxu0 0.0
    %1113 = vmatpush2.msra.mxu0 0.0
    %1114 = vmatprep.subr.mxu0 0.0
    %1115 = vmatpush2.msra.mxu0 0.0
    %1116 = vmatprep.subr.mxu0 0.0
    %1117 = vmatpush2.msra.mxu0 0.0
    %1118 = vmatprep.subr.mxu0 0.0
    %1119 = vmatpush2.msra.mxu0 0.0
    %1120 = vmatprep.subr.mxu0 0.0
    %1121 = vmatpush2.msra.mxu0 0.0
    %1122 = vmatprep.subr.mxu0 0.0
    %1123 = vmatpush2.msra.mxu0 0.0
    %1124 = vmatprep.subr.mxu0 0.0
    %1125 = vmatpush2.msra.mxu0 0.0
    %1126 = vmatprep.subr.mxu0 0.0
    %1127 = vmatpush2.msra.mxu0 0.0
    %1128 = vmatprep.subr.mxu0 0.0
    %1129 = vmatpush2.msra.mxu0 0.0
    %1130 = vmatprep.subr.mxu0 0.0
    %1131 = vmatpush2.msra.mxu0 0.0
    %1132 = vmatprep.mubr.f32.mxu0 0.0
    %1133 = vmatmul.mubr.f32.gmra.mxu0 %v1064
    %v1134 = vpop.f32.mrf.mxu0
    %v1135 = vadd.f32 %v1057, %v1134
    %v1136 = vpop.f32.mrf.mxu0
    %1137 = vmatprep.mubr.f32.mxu0 0.0
    %1138 = vmatmul.mubr.f32.gmra.mxu0 %v1066
    %v1139 = vpop.f32.mrf.mxu0
    %v1140 = vadd.f32 %v1057, %v1139
    %v1141 = vpop.f32.mrf.mxu0
    %1142 = vdwg.mxu0
    %v1143 = vxor.u32 %v1135, 2147483648
    %v1144 = vmul.f32 %v1143, 1.442695
    %v1145 = vpow.pop %v1144
    %v1146 = vadd.f32 %v1145, 1.0
    %v1147 = vrcp.pop %v1146
    %v1148 = vmul.f32 1.0, %v1147
    %v1149 = vtanh.pop %v1135
    %1151 = vrot.lane.b32.xlu0 %v1149, 64
    %v1152 = vpop.permute.xlu0 %1151
    %v1154 = vmul.f32 %v1148, %v1152
    %v1155 = vtanh.pop %v1154
    %1157 = vrot.lane.b32.xlu0 %v1155, 96
    %v1158 = vpop.permute.xlu0 %1157
    %v1160 = vmul.f32 %v1148, %v1158
    %1162 = vrot.lane.b32.xlu0 %v1160, 32
    %v1163 = vpop.permute.xlu0 %1162
    %v1164 = vsel %vm193, %v1163, 0
    %1166 = vmatprep.subr.mxu0 0.0
    %1167 = vmatpush1.msra.mxu0 0.0
    %1168 = vmatprep.subr.mxu0 0.0
    %1169 = vmatpush1.msra.mxu0 0.0
    %1170 = vmatprep.subr.mxu0 0.0
    %1171 = vmatpush1.msra.mxu0 0.0
    %1172 = vmatprep.subr.mxu0 0.0
    %1173 = vmatpush1.msra.mxu0 0.0
    %1174 = vmatprep.subr.mxu0 0.0
    %1175 = vmatpush1.msra.mxu0 0.0
    %1176 = vmatprep.subr.mxu0 0.0
    %1177 = vmatpush1.msra.mxu0 0.0
    %1178 = vmatprep.subr.mxu0 0.0
    %1179 = vmatpush1.msra.mxu0 0.0
    %1180 = vmatprep.subr.mxu0 0.0
    %1181 = vmatpush1.msra.mxu0 0.0
    %1182 = vmatprep.subr.mxu0 0.0
    %1183 = vmatpush1.msra.mxu0 0.0
    %1184 = vmatprep.subr.mxu0 0.0
    %1185 = vmatpush1.msra.mxu0 0.0
    %1186 = vmatprep.subr.mxu0 0.0
    %1187 = vmatpush1.msra.mxu0 0.0
    %1188 = vmatprep.subr.mxu0 0.0
    %1189 = vmatpush1.msra.mxu0 0.0
    %1190 = vmatprep.subr.mxu0 0.0
    %1191 = vmatpush1.msra.mxu0 %v1052
    %1192 = vmatprep.subr.mxu0 0.0
    %1193 = vmatpush1.msra.mxu0 %v1051
    %1194 = vmatprep.subr.mxu0 0.0
    %1195 = vmatpush1.msra.mxu0 %v1050
    %1196 = vmatprep.subr.mxu0 0.0
    %1197 = vmatpush1.msra.mxu0 %v1049
    %1198 = vmatprep.subr.mxu0 0.0
    %1199 = vmatpush2.msra.mxu0 0.0
    %1200 = vmatprep.subr.mxu0 0.0
    %1201 = vmatpush2.msra.mxu0 0.0
    %1202 = vmatprep.subr.mxu0 0.0
    %1203 = vmatpush2.msra.mxu0 0.0
    %1204 = vmatprep.subr.mxu0 0.0
    %1205 = vmatpush2.msra.mxu0 0.0
    %1206 = vmatprep.subr.mxu0 0.0
    %1207 = vmatpush2.msra.mxu0 0.0
    %1208 = vmatprep.subr.mxu0 0.0
    %1209 = vmatpush2.msra.mxu0 0.0
    %1210 = vmatprep.subr.mxu0 0.0
    %1211 = vmatpush2.msra.mxu0 0.0
    %1212 = vmatprep.subr.mxu0 0.0
    %1213 = vmatpush2.msra.mxu0 0.0
    %1214 = vmatprep.subr.mxu0 0.0
    %1215 = vmatpush2.msra.mxu0 0.0
    %1216 = vmatprep.subr.mxu0 0.0
    %1217 = vmatpush2.msra.mxu0 0.0
    %1218 = vmatprep.subr.mxu0 0.0
    %1219 = vmatpush2.msra.mxu0 0.0
    %1220 = vmatprep.subr.mxu0 0.0
    %1221 = vmatpush2.msra.mxu0 0.0
    %1222 = vmatprep.subr.mxu0 0.0
    %1223 = vmatpush2.msra.mxu0 0.0
    %1224 = vmatprep.subr.mxu0 0.0
    %1225 = vmatpush2.msra.mxu0 0.0
    %1226 = vmatprep.subr.mxu0 0.0
    %1227 = vmatpush2.msra.mxu0 0.0
    %1228 = vmatprep.subr.mxu0 0.0
    %1229 = vmatpush2.msra.mxu0 0.0
    %1230 = vmatprep.mubr.f32.mxu0 0.0
    %1231 = vmatmul.mubr.f32.gmra.mxu0 %v1164
    %v1232 = vpop.f32.mrf.mxu0
    %v1233 = vadd.f32 0.0, %v1232
    %v1234 = vpop.f32.mrf.mxu0
    %1235 = vdwg.mxu0
    %v1237 = vrot.slane %v1233, 6
    %v1239 = vadd.f32 %v1135, %v1237
    %v1240 = vxor.u32 %v1239, 2147483648
    %v1241 = vmul.f32 %v1240, 1.442695
    %v1242 = vpow.pop %v1241
    %v1243 = vadd.f32 %v1242, 1.0
    %v1244 = vrcp.pop %v1243
    %v1245 = vmul.f32 1.0, %v1244
    %v1246 = vtanh.pop %v1239
    %v1248 = vrot.slane %v1154, 6
    %1249 = vrot.lane.b32.xlu0 %v1248, 32
    %v1250 = vpop.permute.xlu0 %1249
    %v1252 = vmul.f32 %v1245, %v1250
    %1254 = vrot.lane.b32.xlu0 %v1246, 64
    %v1255 = vpop.permute.xlu0 %1254
    %v1257 = vmul.f32 %v1245, %v1255
    %1259 = vrot.lane.b32.xlu0 %v1257, 32
    %v1260 = vpop.permute.xlu0 %1259
    %v1262 = vadd.f32 %v1252, %v1260
    %v1263 = vtanh.pop %v1262
    %1265 = vrot.lane.b32.xlu0 %v1263, 64
    %v1266 = vpop.permute.xlu0 %1265
    %v1268 = vmul.f32 %v1245, %v1266
    %v1270 = vrot.slane %v1268, 2
    %1271 = vrot.lane.b32.xlu0 %v1270, 32
    %v1272 = vpop.permute.xlu0 %1271
    %v1273 = vsel %vm193, %v1272, 0
    %1275 = vmatprep.subr.mxu0 0.0
    %1276 = vmatpush1.msra.mxu0 0.0
    %1277 = vmatprep.subr.mxu0 0.0
    %1278 = vmatpush1.msra.mxu0 0.0
    %1279 = vmatprep.subr.mxu0 0.0
    %1280 = vmatpush1.msra.mxu0 0.0
    %1281 = vmatprep.subr.mxu0 0.0
    %1282 = vmatpush1.msra.mxu0 0.0
    %1283 = vmatprep.subr.mxu0 0.0
    %1284 = vmatpush1.msra.mxu0 0.0
    %1285 = vmatprep.subr.mxu0 0.0
    %1286 = vmatpush1.msra.mxu0 0.0
    %1287 = vmatprep.subr.mxu0 0.0
    %1288 = vmatpush1.msra.mxu0 0.0
    %1289 = vmatprep.subr.mxu0 0.0
    %1290 = vmatpush1.msra.mxu0 0.0
    %1291 = vmatprep.subr.mxu0 0.0
    %1292 = vmatpush1.msra.mxu0 0.0
    %1293 = vmatprep.subr.mxu0 0.0
    %1294 = vmatpush1.msra.mxu0 0.0
    %1295 = vmatprep.subr.mxu0 0.0
    %1296 = vmatpush1.msra.mxu0 0.0
    %1297 = vmatprep.subr.mxu0 0.0
    %1298 = vmatpush1.msra.mxu0 0.0
    %1299 = vmatprep.subr.mxu0 0.0
    %1300 = vmatpush1.msra.mxu0 %v1052
    %1301 = vmatprep.subr.mxu0 0.0
    %1302 = vmatpush1.msra.mxu0 %v1051
    %1303 = vmatprep.subr.mxu0 0.0
    %1304 = vmatpush1.msra.mxu0 %v1050
    %1305 = vmatprep.subr.mxu0 0.0
    %1306 = vmatpush1.msra.mxu0 %v1049
    %1307 = vmatprep.subr.mxu0 0.0
    %1308 = vmatpush2.msra.mxu0 0.0
    %1309 = vmatprep.subr.mxu0 0.0
    %1310 = vmatpush2.msra.mxu0 0.0
    %1311 = vmatprep.subr.mxu0 0.0
    %1312 = vmatpush2.msra.mxu0 0.0
    %1313 = vmatprep.subr.mxu0 0.0
    %1314 = vmatpush2.msra.mxu0 0.0
    %1315 = vmatprep.subr.mxu0 0.0
    %1316 = vmatpush2.msra.mxu0 0.0
    %1317 = vmatprep.subr.mxu0 0.0
    %1318 = vmatpush2.msra.mxu0 0.0
    %1319 = vmatprep.subr.mxu0 0.0
    %1320 = vmatpush2.msra.mxu0 0.0
    %1321 = vmatprep.subr.mxu0 0.0
    %1322 = vmatpush2.msra.mxu0 0.0
    %1323 = vmatprep.subr.mxu0 0.0
    %1324 = vmatpush2.msra.mxu0 0.0
    %1325 = vmatprep.subr.mxu0 0.0
    %1326 = vmatpush2.msra.mxu0 0.0
    %1327 = vmatprep.subr.mxu0 0.0
    %1328 = vmatpush2.msra.mxu0 0.0
    %1329 = vmatprep.subr.mxu0 0.0
    %1330 = vmatpush2.msra.mxu0 0.0
    %1331 = vmatprep.subr.mxu0 0.0
    %1332 = vmatpush2.msra.mxu0 0.0
    %1333 = vmatprep.subr.mxu0 0.0
    %1334 = vmatpush2.msra.mxu0 0.0
    %1335 = vmatprep.subr.mxu0 0.0
    %1336 = vmatpush2.msra.mxu0 0.0
    %1337 = vmatprep.subr.mxu0 0.0
    %1338 = vmatpush2.msra.mxu0 0.0
    %1339 = vmatprep.mubr.f32.mxu0 0.0
    %1340 = vmatmul.mubr.f32.gmra.mxu0 %v1273
    %v1341 = vpop.f32.mrf.mxu0
    %v1342 = vadd.f32 0.0, %v1341
    %v1343 = vpop.f32.mrf.mxu0
    %1344 = vdwg.mxu0
    %v1346 = vrot.slane %v1342, 4
    %v1348 = vadd.f32 %v1135, %v1346
    %v1349 = vxor.u32 %v1348, 2147483648
    %v1350 = vmul.f32 %v1349, 1.442695
    %v1351 = vpow.pop %v1350
    %v1352 = vadd.f32 %v1351, 1.0
    %v1353 = vrcp.pop %v1352
    %v1354 = vmul.f32 1.0, %v1353
    %v1355 = vtanh.pop %v1348
    %v1357 = vrot.slane %v1262, 6
    %v1359 = vmul.f32 %v1354, %v1357
    %1361 = vrot.lane.b32.xlu0 %v1355, 64
    %v1362 = vpop.permute.xlu0 %1361
    %v1364 = vmul.f32 %v1354, %v1362
    %1366 = vrot.lane.b32.xlu0 %v1364, 32
    %v1367 = vpop.permute.xlu0 %1366
    %v1369 = vadd.f32 %v1359, %v1367
    %v1370 = vtanh.pop %v1369
    %1372 = vrot.lane.b32.xlu0 %v1370, 64
    %v1373 = vpop.permute.xlu0 %1372
    %v1375 = vmul.f32 %v1354, %v1373
    %v1377 = vrot.slane %v1375, 4
    %1378 = vrot.lane.b32.xlu0 %v1377, 32
    %v1379 = vpop.permute.xlu0 %1378
    %v1380 = vsel %vm193, %v1379, 0
    %1382 = vmatprep.subr.mxu0 0.0
    %1383 = vmatpush1.msra.mxu0 0.0
    %1384 = vmatprep.subr.mxu0 0.0
    %1385 = vmatpush1.msra.mxu0 0.0
    %1386 = vmatprep.subr.mxu0 0.0
    %1387 = vmatpush1.msra.mxu0 0.0
    %1388 = vmatprep.subr.mxu0 0.0
    %1389 = vmatpush1.msra.mxu0 0.0
    %1390 = vmatprep.subr.mxu0 0.0
    %1391 = vmatpush1.msra.mxu0 0.0
    %1392 = vmatprep.subr.mxu0 0.0
    %1393 = vmatpush1.msra.mxu0 0.0
    %1394 = vmatprep.subr.mxu0 0.0
    %1395 = vmatpush1.msra.mxu0 0.0
    %1396 = vmatprep.subr.mxu0 0.0
    %1397 = vmatpush1.msra.mxu0 0.0
    %1398 = vmatprep.subr.mxu0 0.0
    %1399 = vmatpush1.msra.mxu0 0.0
    %1400 = vmatprep.subr.mxu0 0.0
    %1401 = vmatpush1.msra.mxu0 0.0
    %1402 = vmatprep.subr.mxu0 0.0
    %1403 = vmatpush1.msra.mxu0 0.0
    %1404 = vmatprep.subr.mxu0 0.0
    %1405 = vmatpush1.msra.mxu0 0.0
    %1406 = vmatprep.subr.mxu0 0.0
    %1407 = vmatpush1.msra.mxu0 %v1052
    %1408 = vmatprep.subr.mxu0 0.0
    %1409 = vmatpush1.msra.mxu0 %v1051
    %1410 = vmatprep.subr.mxu0 0.0
    %1411 = vmatpush1.msra.mxu0 %v1050
    %1412 = vmatprep.subr.mxu0 0.0
    %1413 = vmatpush1.msra.mxu0 %v1049
    %1414 = vmatprep.subr.mxu0 0.0
    %1415 = vmatpush2.msra.mxu0 0.0
    %1416 = vmatprep.subr.mxu0 0.0
    %1417 = vmatpush2.msra.mxu0 0.0
    %1418 = vmatprep.subr.mxu0 0.0
    %1419 = vmatpush2.msra.mxu0 0.0
    %1420 = vmatprep.subr.mxu0 0.0
    %1421 = vmatpush2.msra.mxu0 0.0
    %1422 = vmatprep.subr.mxu0 0.0
    %1423 = vmatpush2.msra.mxu0 0.0
    %1424 = vmatprep.subr.mxu0 0.0
    %1425 = vmatpush2.msra.mxu0 0.0
    %1426 = vmatprep.subr.mxu0 0.0
    %1427 = vmatpush2.msra.mxu0 0.0
    %1428 = vmatprep.subr.mxu0 0.0
    %1429 = vmatpush2.msra.mxu0 0.0
    %1430 = vmatprep.subr.mxu0 0.0
    %1431 = vmatpush2.msra.mxu0 0.0
    %1432 = vmatprep.subr.mxu0 0.0
    %1433 = vmatpush2.msra.mxu0 0.0
    %1434 = vmatprep.subr.mxu0 0.0
    %1435 = vmatpush2.msra.mxu0 0.0
    %1436 = vmatprep.subr.mxu0 0.0
    %1437 = vmatpush2.msra.mxu0 0.0
    %1438 = vmatprep.subr.mxu0 0.0
    %1439 = vmatpush2.msra.mxu0 0.0
    %1440 = vmatprep.subr.mxu0 0.0
    %1441 = vmatpush2.msra.mxu0 0.0
    %1442 = vmatprep.subr.mxu0 0.0
    %1443 = vmatpush2.msra.mxu0 0.0
    %1444 = vmatprep.subr.mxu0 0.0
    %1445 = vmatpush2.msra.mxu0 0.0
    %1446 = vmatprep.mubr.f32.mxu0 0.0
    %1447 = vmatmul.mubr.f32.gmra.mxu0 %v1380
    %v1448 = vpop.f32.mrf.mxu0
    %v1449 = vadd.f32 0.0, %v1448
    %v1450 = vpop.f32.mrf.mxu0
    %1451 = vdwg.mxu0
    %v1453 = vrot.slane %v1449, 2
    %v1455 = vadd.f32 %v1135, %v1453
    %v1456 = vxor.u32 %v1455, 2147483648
    %v1457 = vmul.f32 %v1456, 1.442695
    %v1458 = vpow.pop %v1457
    %v1459 = vadd.f32 %v1458, 1.0
    %v1460 = vrcp.pop %v1459
    %v1461 = vmul.f32 1.0, %v1460
    %v1462 = vtanh.pop %v1455
    %v1464 = vrot.slane %v1369, 6
    %v1466 = vmul.f32 %v1461, %v1464
    %1468 = vrot.lane.b32.xlu0 %v1462, 64
    %v1469 = vpop.permute.xlu0 %1468
    %v1471 = vmul.f32 %v1461, %v1469
    %1473 = vrot.lane.b32.xlu0 %v1471, 32
    %v1474 = vpop.permute.xlu0 %1473
    %v1476 = vadd.f32 %v1466, %v1474
    %v1477 = vtanh.pop %v1476
    %1479 = vrot.lane.b32.xlu0 %v1477, 64
    %v1480 = vpop.permute.xlu0 %1479
    %v1482 = vmul.f32 %v1461, %v1480
    %v1484 = vrot.slane %v1482, 6
    %1485 = vrot.lane.b32.xlu0 %v1484, 32
    %v1486 = vpop.permute.xlu0 %1485
    %v1487 = vsel %vm193, %v1486, 0
    %1489 = vmatprep.subr.mxu0 0.0
    %1490 = vmatpush1.msra.mxu0 0.0
    %1491 = vmatprep.subr.mxu0 0.0
    %1492 = vmatpush1.msra.mxu0 0.0
    %1493 = vmatprep.subr.mxu0 0.0
    %1494 = vmatpush1.msra.mxu0 0.0
    %1495 = vmatprep.subr.mxu0 0.0
    %1496 = vmatpush1.msra.mxu0 0.0
    %1497 = vmatprep.subr.mxu0 0.0
    %1498 = vmatpush1.msra.mxu0 0.0
    %1499 = vmatprep.subr.mxu0 0.0
    %1500 = vmatpush1.msra.mxu0 0.0
    %1501 = vmatprep.subr.mxu0 0.0
    %1502 = vmatpush1.msra.mxu0 0.0
    %1503 = vmatprep.subr.mxu0 0.0
    %1504 = vmatpush1.msra.mxu0 0.0
    %1505 = vmatprep.subr.mxu0 0.0
    %1506 = vmatpush1.msra.mxu0 0.0
    %1507 = vmatprep.subr.mxu0 0.0
    %1508 = vmatpush1.msra.mxu0 0.0
    %1509 = vmatprep.subr.mxu0 0.0
    %1510 = vmatpush1.msra.mxu0 0.0
    %1511 = vmatprep.subr.mxu0 0.0
    %1512 = vmatpush1.msra.mxu0 0.0
    %1513 = vmatprep.subr.mxu0 0.0
    %1514 = vmatpush1.msra.mxu0 %v1052
    %1515 = vmatprep.subr.mxu0 0.0
    %1516 = vmatpush1.msra.mxu0 %v1051
    %1517 = vmatprep.subr.mxu0 0.0
    %1518 = vmatpush1.msra.mxu0 %v1050
    %1519 = vmatprep.subr.mxu0 0.0
    %1520 = vmatpush1.msra.mxu0 %v1049
    %1521 = vmatprep.subr.mxu0 0.0
    %1522 = vmatpush2.msra.mxu0 0.0
    %1523 = vmatprep.subr.mxu0 0.0
    %1524 = vmatpush2.msra.mxu0 0.0
    %1525 = vmatprep.subr.mxu0 0.0
    %1526 = vmatpush2.msra.mxu0 0.0
    %1527 = vmatprep.subr.mxu0 0.0
    %1528 = vmatpush2.msra.mxu0 0.0
    %1529 = vmatprep.subr.mxu0 0.0
    %1530 = vmatpush2.msra.mxu0 0.0
    %1531 = vmatprep.subr.mxu0 0.0
    %1532 = vmatpush2.msra.mxu0 0.0
    %1533 = vmatprep.subr.mxu0 0.0
    %1534 = vmatpush2.msra.mxu0 0.0
    %1535 = vmatprep.subr.mxu0 0.0
    %1536 = vmatpush2.msra.mxu0 0.0
    %1537 = vmatprep.subr.mxu0 0.0
    %1538 = vmatpush2.msra.mxu0 0.0
    %1539 = vmatprep.subr.mxu0 0.0
    %1540 = vmatpush2.msra.mxu0 0.0
    %1541 = vmatprep.subr.mxu0 0.0
    %1542 = vmatpush2.msra.mxu0 0.0
    %1543 = vmatprep.subr.mxu0 0.0
    %1544 = vmatpush2.msra.mxu0 0.0
    %1545 = vmatprep.subr.mxu0 0.0
    %1546 = vmatpush2.msra.mxu0 0.0
    %1547 = vmatprep.subr.mxu0 0.0
    %1548 = vmatpush2.msra.mxu0 0.0
    %1549 = vmatprep.subr.mxu0 0.0
    %1550 = vmatpush2.msra.mxu0 0.0
    %1551 = vmatprep.subr.mxu0 0.0
    %1552 = vmatpush2.msra.mxu0 0.0
    %1553 = vmatprep.mubr.f32.mxu0 0.0
    %1554 = vmatmul.mubr.f32.gmra.mxu0 %v1487
    %v1555 = vpop.f32.mrf.mxu0
    %v1556 = vadd.f32 0.0, %v1555
    %v1557 = vpop.f32.mrf.mxu0
    %1558 = vdwg.mxu0
    %v1559 = vadd.f32 %v1140, %v1556
    %v1560 = vxor.u32 %v1559, 2147483648
    %v1561 = vmul.f32 %v1560, 1.442695
    %v1562 = vpow.pop %v1561
    %v1563 = vadd.f32 %v1562, 1.0
    %v1564 = vrcp.pop %v1563
    %v1565 = vmul.f32 1.0, %v1564
    %v1566 = vtanh.pop %v1559
    %v1568 = vrot.slane %v1476, 6
    %v1570 = vmul.f32 %v1565, %v1568
    %1572 = vrot.lane.b32.xlu0 %v1566, 64
    %v1573 = vpop.permute.xlu0 %1572
    %v1575 = vmul.f32 %v1565, %v1573
    %1577 = vrot.lane.b32.xlu0 %v1575, 32
    %v1578 = vpop.permute.xlu0 %1577
    %v1580 = vadd.f32 %v1570, %v1578
    %v1581 = vtanh.pop %v1580
    %1583 = vrot.lane.b32.xlu0 %v1581, 64
    %v1584 = vpop.permute.xlu0 %1583
    %v1586 = vmul.f32 %v1565, %v1584
    %1588 = vrot.lane.b32.xlu0 %v1586, 32
    %v1589 = vpop.permute.xlu0 %1588
    %v1590 = vsel %vm193, %v1589, 0
    %1592 = vmatprep.subr.mxu0 0.0
    %1593 = vmatpush1.msra.mxu0 0.0
    %1594 = vmatprep.subr.mxu0 0.0
    %1595 = vmatpush1.msra.mxu0 0.0
    %1596 = vmatprep.subr.mxu0 0.0
    %1597 = vmatpush1.msra.mxu0 0.0
    %1598 = vmatprep.subr.mxu0 0.0
    %1599 = vmatpush1.msra.mxu0 0.0
    %1600 = vmatprep.subr.mxu0 0.0
    %1601 = vmatpush1.msra.mxu0 0.0
    %1602 = vmatprep.subr.mxu0 0.0
    %1603 = vmatpush1.msra.mxu0 0.0
    %1604 = vmatprep.subr.mxu0 0.0
    %1605 = vmatpush1.msra.mxu0 0.0
    %1606 = vmatprep.subr.mxu0 0.0
    %1607 = vmatpush1.msra.mxu0 0.0
    %1608 = vmatprep.subr.mxu0 0.0
    %1609 = vmatpush1.msra.mxu0 0.0
    %1610 = vmatprep.subr.mxu0 0.0
    %1611 = vmatpush1.msra.mxu0 0.0
    %1612 = vmatprep.subr.mxu0 0.0
    %1613 = vmatpush1.msra.mxu0 0.0
    %1614 = vmatprep.subr.mxu0 0.0
    %1615 = vmatpush1.msra.mxu0 0.0
    %1616 = vmatprep.subr.mxu0 0.0
    %1617 = vmatpush1.msra.mxu0 %v1052
    %1618 = vmatprep.subr.mxu0 0.0
    %1619 = vmatpush1.msra.mxu0 %v1051
    %1620 = vmatprep.subr.mxu0 0.0
    %1621 = vmatpush1.msra.mxu0 %v1050
    %1622 = vmatprep.subr.mxu0 0.0
    %1623 = vmatpush1.msra.mxu0 %v1049
    %1624 = vmatprep.subr.mxu0 0.0
    %1625 = vmatpush2.msra.mxu0 0.0
    %1626 = vmatprep.subr.mxu0 0.0
    %1627 = vmatpush2.msra.mxu0 0.0
    %1628 = vmatprep.subr.mxu0 0.0
    %1629 = vmatpush2.msra.mxu0 0.0
    %1630 = vmatprep.subr.mxu0 0.0
    %1631 = vmatpush2.msra.mxu0 0.0
    %1632 = vmatprep.subr.mxu0 0.0
    %1633 = vmatpush2.msra.mxu0 0.0
    %1634 = vmatprep.subr.mxu0 0.0
    %1635 = vmatpush2.msra.mxu0 0.0
    %1636 = vmatprep.subr.mxu0 0.0
    %1637 = vmatpush2.msra.mxu0 0.0
    %1638 = vmatprep.subr.mxu0 0.0
    %1639 = vmatpush2.msra.mxu0 0.0
    %1640 = vmatprep.subr.mxu0 0.0
    %1641 = vmatpush2.msra.mxu0 0.0
    %1642 = vmatprep.subr.mxu0 0.0
    %1643 = vmatpush2.msra.mxu0 0.0
    %1644 = vmatprep.subr.mxu0 0.0
    %1645 = vmatpush2.msra.mxu0 0.0
    %1646 = vmatprep.subr.mxu0 0.0
    %1647 = vmatpush2.msra.mxu0 0.0
    %1648 = vmatprep.subr.mxu0 0.0
    %1649 = vmatpush2.msra.mxu0 0.0
    %1650 = vmatprep.subr.mxu0 0.0
    %1651 = vmatpush2.msra.mxu0 0.0
    %1652 = vmatprep.subr.mxu0 0.0
    %1653 = vmatpush2.msra.mxu0 0.0
    %1654 = vmatprep.subr.mxu0 0.0
    %1655 = vmatpush2.msra.mxu0 0.0
    %1656 = vmatprep.mubr.f32.mxu0 0.0
    %1657 = vmatmul.mubr.f32.gmra.mxu0 %v1590
    %v1658 = vpop.f32.mrf.mxu0
    %v1659 = vadd.f32 0.0, %v1658
    %v1660 = vpop.f32.mrf.mxu0
    %1661 = vdwg.mxu0
    %v1663 = vrot.slane %v1659, 6
    %v1665 = vadd.f32 %v1140, %v1663
    %v1666 = vxor.u32 %v1665, 2147483648
    %v1667 = vmul.f32 %v1666, 1.442695
    %v1668 = vpow.pop %v1667
    %v1669 = vadd.f32 %v1668, 1.0
    %v1670 = vrcp.pop %v1669
    %v1671 = vmul.f32 1.0, %v1670
    %v1672 = vtanh.pop %v1665
    %v1674 = vrot.slane %v1580, 6
    %v1676 = vmul.f32 %v1671, %v1674
    %1678 = vrot.lane.b32.xlu0 %v1672, 64
    %v1679 = vpop.permute.xlu0 %1678
    %v1681 = vmul.f32 %v1671, %v1679
    %1683 = vrot.lane.b32.xlu0 %v1681, 32
    %v1684 = vpop.permute.xlu0 %1683
    %v1686 = vadd.f32 %v1676, %v1684
    %v1687 = vtanh.pop %v1686
    %1689 = vrot.lane.b32.xlu0 %v1687, 64
    %v1690 = vpop.permute.xlu0 %1689
    %v1692 = vmul.f32 %v1671, %v1690
    %v1694 = vrot.slane %v1692, 2
    %1695 = vrot.lane.b32.xlu0 %v1694, 32
    %v1696 = vpop.permute.xlu0 %1695
    %v1697 = vsel %vm193, %v1696, 0
    %1699 = vmatprep.subr.mxu0 0.0
    %1700 = vmatpush1.msra.mxu0 0.0
    %1701 = vmatprep.subr.mxu0 0.0
    %1702 = vmatpush1.msra.mxu0 0.0
    %1703 = vmatprep.subr.mxu0 0.0
    %1704 = vmatpush1.msra.mxu0 0.0
    %1705 = vmatprep.subr.mxu0 0.0
    %1706 = vmatpush1.msra.mxu0 0.0
    %1707 = vmatprep.subr.mxu0 0.0
    %1708 = vmatpush1.msra.mxu0 0.0
    %1709 = vmatprep.subr.mxu0 0.0
    %1710 = vmatpush1.msra.mxu0 0.0
    %1711 = vmatprep.subr.mxu0 0.0
    %1712 = vmatpush1.msra.mxu0 0.0
    %1713 = vmatprep.subr.mxu0 0.0
    %1714 = vmatpush1.msra.mxu0 0.0
    %1715 = vmatprep.subr.mxu0 0.0
    %1716 = vmatpush1.msra.mxu0 0.0
    %1717 = vmatprep.subr.mxu0 0.0
    %1718 = vmatpush1.msra.mxu0 0.0
    %1719 = vmatprep.subr.mxu0 0.0
    %1720 = vmatpush1.msra.mxu0 0.0
    %1721 = vmatprep.subr.mxu0 0.0
    %1722 = vmatpush1.msra.mxu0 0.0
    %1723 = vmatprep.subr.mxu0 0.0
    %1724 = vmatpush1.msra.mxu0 %v1052
    %1725 = vmatprep.subr.mxu0 0.0
    %1726 = vmatpush1.msra.mxu0 %v1051
    %1727 = vmatprep.subr.mxu0 0.0
    %1728 = vmatpush1.msra.mxu0 %v1050
    %1729 = vmatprep.subr.mxu0 0.0
    %1730 = vmatpush1.msra.mxu0 %v1049
    %1731 = vmatprep.subr.mxu0 0.0
    %1732 = vmatpush2.msra.mxu0 0.0
    %1733 = vmatprep.subr.mxu0 0.0
    %1734 = vmatpush2.msra.mxu0 0.0
    %1735 = vmatprep.subr.mxu0 0.0
    %1736 = vmatpush2.msra.mxu0 0.0
    %1737 = vmatprep.subr.mxu0 0.0
    %1738 = vmatpush2.msra.mxu0 0.0
    %1739 = vmatprep.subr.mxu0 0.0
    %1740 = vmatpush2.msra.mxu0 0.0
    %1741 = vmatprep.subr.mxu0 0.0
    %1742 = vmatpush2.msra.mxu0 0.0
    %1743 = vmatprep.subr.mxu0 0.0
    %1744 = vmatpush2.msra.mxu0 0.0
    %1745 = vmatprep.subr.mxu0 0.0
    %1746 = vmatpush2.msra.mxu0 0.0
    %1747 = vmatprep.subr.mxu0 0.0
    %1748 = vmatpush2.msra.mxu0 0.0
    %1749 = vmatprep.subr.mxu0 0.0
    %1750 = vmatpush2.msra.mxu0 0.0
    %1751 = vmatprep.subr.mxu0 0.0
    %1752 = vmatpush2.msra.mxu0 0.0
    %1753 = vmatprep.subr.mxu0 0.0
    %1754 = vmatpush2.msra.mxu0 0.0
    %1755 = vmatprep.subr.mxu0 0.0
    %1756 = vmatpush2.msra.mxu0 0.0
    %1757 = vmatprep.subr.mxu0 0.0
    %1758 = vmatpush2.msra.mxu0 0.0
    %1759 = vmatprep.subr.mxu0 0.0
    %1760 = vmatpush2.msra.mxu0 0.0
    %1761 = vmatprep.subr.mxu0 0.0
    %1762 = vmatpush2.msra.mxu0 0.0
    %1763 = vmatprep.mubr.f32.mxu0 0.0
    %1764 = vmatmul.mubr.f32.gmra.mxu0 %v1697
    %v1765 = vpop.f32.mrf.mxu0
    %v1766 = vadd.f32 0.0, %v1765
    %v1767 = vpop.f32.mrf.mxu0
    %1768 = vdwg.mxu0
    %v1770 = vrot.slane %v1766, 4
    %v1772 = vadd.f32 %v1140, %v1770
    %v1773 = vxor.u32 %v1772, 2147483648
    %v1774 = vmul.f32 %v1773, 1.442695
    %v1775 = vpow.pop %v1774
    %v1776 = vadd.f32 %v1775, 1.0
    %v1777 = vrcp.pop %v1776
    %v1778 = vmul.f32 1.0, %v1777
    %v1779 = vtanh.pop %v1772
    %v1781 = vrot.slane %v1686, 6
    %v1783 = vmul.f32 %v1778, %v1781
    %1785 = vrot.lane.b32.xlu0 %v1779, 64
    %v1786 = vpop.permute.xlu0 %1785
    %v1788 = vmul.f32 %v1778, %v1786
    %1790 = vrot.lane.b32.xlu0 %v1788, 32
    %v1791 = vpop.permute.xlu0 %1790
    %v1793 = vadd.f32 %v1783, %v1791
    %v1794 = vtanh.pop %v1793
    %1796 = vrot.lane.b32.xlu0 %v1794, 64
    %v1797 = vpop.permute.xlu0 %1796
    %v1799 = vmul.f32 %v1778, %v1797
    %v1801 = vrot.slane %v1799, 4
    %1802 = vrot.lane.b32.xlu0 %v1801, 32
    %v1803 = vpop.permute.xlu0 %1802
    %v1804 = vsel %vm193, %v1803, 0
    %1806 = vmatprep.subr.mxu0 0.0
    %1807 = vmatpush1.msra.mxu0 0.0
    %1808 = vmatprep.subr.mxu0 0.0
    %1809 = vmatpush1.msra.mxu0 0.0
    %1810 = vmatprep.subr.mxu0 0.0
    %1811 = vmatpush1.msra.mxu0 0.0
    %1812 = vmatprep.subr.mxu0 0.0
    %1813 = vmatpush1.msra.mxu0 0.0
    %1814 = vmatprep.subr.mxu0 0.0
    %1815 = vmatpush1.msra.mxu0 0.0
    %1816 = vmatprep.subr.mxu0 0.0
    %1817 = vmatpush1.msra.mxu0 0.0
    %1818 = vmatprep.subr.mxu0 0.0
    %1819 = vmatpush1.msra.mxu0 0.0
    %1820 = vmatprep.subr.mxu0 0.0
    %1821 = vmatpush1.msra.mxu0 0.0
    %1822 = vmatprep.subr.mxu0 0.0
    %1823 = vmatpush1.msra.mxu0 0.0
    %1824 = vmatprep.subr.mxu0 0.0
    %1825 = vmatpush1.msra.mxu0 0.0
    %1826 = vmatprep.subr.mxu0 0.0
    %1827 = vmatpush1.msra.mxu0 0.0
    %1828 = vmatprep.subr.mxu0 0.0
    %1829 = vmatpush1.msra.mxu0 0.0
    %1830 = vmatprep.subr.mxu0 0.0
    %1831 = vmatpush1.msra.mxu0 %v1052
    %1832 = vmatprep.subr.mxu0 0.0
    %1833 = vmatpush1.msra.mxu0 %v1051
    %1834 = vmatprep.subr.mxu0 0.0
    %1835 = vmatpush1.msra.mxu0 %v1050
    %1836 = vmatprep.subr.mxu0 0.0
    %1837 = vmatpush1.msra.mxu0 %v1049
    %1838 = vmatprep.subr.mxu0 0.0
    %1839 = vmatpush2.msra.mxu0 0.0
    %1840 = vmatprep.subr.mxu0 0.0
    %1841 = vmatpush2.msra.mxu0 0.0
    %1842 = vmatprep.subr.mxu0 0.0
    %1843 = vmatpush2.msra.mxu0 0.0
    %1844 = vmatprep.subr.mxu0 0.0
    %1845 = vmatpush2.msra.mxu0 0.0
    %1846 = vmatprep.subr.mxu0 0.0
    %1847 = vmatpush2.msra.mxu0 0.0
    %1848 = vmatprep.subr.mxu0 0.0
    %1849 = vmatpush2.msra.mxu0 0.0
    %1850 = vmatprep.subr.mxu0 0.0
    %1851 = vmatpush2.msra.mxu0 0.0
    %1852 = vmatprep.subr.mxu0 0.0
    %1853 = vmatpush2.msra.mxu0 0.0
    %1854 = vmatprep.subr.mxu0 0.0
    %1855 = vmatpush2.msra.mxu0 0.0
    %1856 = vmatprep.subr.mxu0 0.0
    %1857 = vmatpush2.msra.mxu0 0.0
    %1858 = vmatprep.subr.mxu0 0.0
    %1859 = vmatpush2.msra.mxu0 0.0
    %1860 = vmatprep.subr.mxu0 0.0
    %1861 = vmatpush2.msra.mxu0 0.0
    %1862 = vmatprep.subr.mxu0 0.0
    %1863 = vmatpush2.msra.mxu0 0.0
    %1864 = vmatprep.subr.mxu0 0.0
    %1865 = vmatpush2.msra.mxu0 0.0
    %1866 = vmatprep.subr.mxu0 0.0
    %1867 = vmatpush2.msra.mxu0 0.0
    %1868 = vmatprep.subr.mxu0 0.0
    %1869 = vmatpush2.msra.mxu0 0.0
    %1870 = vmatprep.mubr.f32.mxu0 0.0
    %1871 = vmatmul.mubr.f32.gmra.mxu0 %v1804
    %v1872 = vpop.f32.mrf.mxu0
    %v1873 = vadd.f32 0.0, %v1872
    %v1874 = vpop.f32.mrf.mxu0
    %1875 = vdwg.mxu0
    %v1877 = vrot.slane %v1873, 2
    %v1879 = vadd.f32 %v1140, %v1877
    %v1880 = vxor.u32 %v1879, 2147483648
    %v1881 = vmul.f32 %v1880, 1.442695
    %v1882 = vpow.pop %v1881
    %v1883 = vadd.f32 %v1882, 1.0
    %v1884 = vrcp.pop %v1883
    %v1885 = vmul.f32 1.0, %v1884
    %v1886 = vtanh.pop %v1879
    %v1888 = vrot.slane %v1793, 6
    %v1890 = vmul.f32 %v1885, %v1888
    %1892 = vrot.lane.b32.xlu0 %v1886, 64
    %v1893 = vpop.permute.xlu0 %1892
    %v1895 = vmul.f32 %v1885, %v1893
    %1897 = vrot.lane.b32.xlu0 %v1895, 32
    %v1898 = vpop.permute.xlu0 %1897
    %v1900 = vadd.f32 %v1890, %v1898
    %v1901 = vtanh.pop %v1900
    %1903 = vrot.lane.b32.xlu0 %v1901, 64
    %v1904 = vpop.permute.xlu0 %1903
    %v1906 = vmul.f32 %v1885, %v1904
    %1908 = vrot.lane.b32.xlu0 %v1038, 32
    %v1909 = vpop.permute.xlu0 %1908
    %1912 = vrot.lane.b32.xlu0 %v1906, 96
    %v1913 = vpop.permute.xlu0 %1912
    %1916 = vrot.lane.b32.xlu0 %v1900, 64
    %v1917 = vpop.permute.xlu0 %1916
    %v1919 = vsel %vm193, %v1909, %v1032
    %vm1920 = vcmask 523264
    %v1921 = vsel %vm1920, %v1919, %v1913
    %vm1922 = vcmask 785408
    %v1923 = vsel %vm1922, %v1921, %v1917
    %v1924 = vtanh.pop %v1923
    %v1925 = vld [vmem:[%s3] sm:$0xff]
    %v1926 = vld [vmem:[%s3 + $0x8] sm:$0xff]
    %v1927 = vld [vmem:[%s3 + $0x10] sm:$0xff]
    %v1928 = vld [vmem:[%s3 + $0x18] sm:$0xff]
    %v1929 = vld [vmem:[%s3 + $0x20] sm:$0xff]
    %v1930 = vld [vmem:[%s3 + $0x28] sm:$0xff]
    %v1931 = vld [vmem:[%s3 + $0x30] sm:$0xff]
    %v1932 = vld [vmem:[%s3 + $0x38] sm:$0xff]
    %v1933 = vld [vmem:[%s3 + $0x40] sm:$0xff]
    %v1934 = vld [vmem:[%s3 + $0x48] sm:$0xff]
    %v1935 = vld [vmem:[%s3 + $0x50] sm:$0xff]
    %v1936 = vld [vmem:[%s3 + $0x58] sm:$0xff]
    %v1937 = vld [vmem:[%s3 + $0x60] sm:$0xff]
    %v1938 = vld [vmem:[%s3 + $0x68] sm:$0xff]
    %v1939 = vld [vmem:[%s3 + $0x70] sm:$0xff]
    %v1940 = vld [vmem:[%s3 + $0x78] sm:$0xff]
    %v1941 = vld [vmem:[%s3 + $0x80] sm:$0x1]
    %v1942 = vlaneseq
    %v1943 = vshrl.u32 %v1942, 7
    %v1944 = vsub.s32 0, %v1943
    %v1945 = vrot.slane %v1941, %v1944
    %v1947 = vrot.slane %v1924, 6
    %1949 = vmatprep.subr.mxu0 0.0
    %1950 = vmatpush1.msra.mxu0 %v1940
    %1951 = vmatprep.subr.mxu0 0.0
    %1952 = vmatpush1.msra.mxu0 %v1939
    %1953 = vmatprep.subr.mxu0 0.0
    %1954 = vmatpush1.msra.mxu0 %v1938
    %1955 = vmatprep.subr.mxu0 0.0
    %1956 = vmatpush1.msra.mxu0 %v1937
    %1957 = vmatprep.subr.mxu0 0.0
    %1958 = vmatpush1.msra.mxu0 %v1936
    %1959 = vmatprep.subr.mxu0 0.0
    %1960 = vmatpush1.msra.mxu0 %v1935
    %1961 = vmatprep.subr.mxu0 0.0
    %1962 = vmatpush1.msra.mxu0 %v1934
    %1963 = vmatprep.subr.mxu0 0.0
    %1964 = vmatpush1.msra.mxu0 %v1933
    %1965 = vmatprep.subr.mxu0 0.0
    %1966 = vmatpush1.msra.mxu0 %v1932
    %1967 = vmatprep.subr.mxu0 0.0
    %1968 = vmatpush1.msra.mxu0 %v1931
    %1969 = vmatprep.subr.mxu0 0.0
    %1970 = vmatpush1.msra.mxu0 %v1930
    %1971 = vmatprep.subr.mxu0 0.0
    %1972 = vmatpush1.msra.mxu0 %v1929
    %1973 = vmatprep.subr.mxu0 0.0
    %1974 = vmatpush1.msra.mxu0 %v1928
    %1975 = vmatprep.subr.mxu0 0.0
    %1976 = vmatpush1.msra.mxu0 %v1927
    %1977 = vmatprep.subr.mxu0 0.0
    %1978 = vmatpush1.msra.mxu0 %v1926
    %1979 = vmatprep.subr.mxu0 0.0
    %1980 = vmatpush1.msra.mxu0 %v1925
    %1981 = vmatprep.subr.mxu0 0.0
    %1982 = vmatpush2.msra.mxu0 0.0
    %1983 = vmatprep.subr.mxu0 0.0
    %1984 = vmatpush2.msra.mxu0 0.0
    %1985 = vmatprep.subr.mxu0 0.0
    %1986 = vmatpush2.msra.mxu0 0.0
    %1987 = vmatprep.subr.mxu0 0.0
    %1988 = vmatpush2.msra.mxu0 0.0
    %1989 = vmatprep.subr.mxu0 0.0
    %1990 = vmatpush2.msra.mxu0 0.0
    %1991 = vmatprep.subr.mxu0 0.0
    %1992 = vmatpush2.msra.mxu0 0.0
    %1993 = vmatprep.subr.mxu0 0.0
    %1994 = vmatpush2.msra.mxu0 0.0
    %1995 = vmatprep.subr.mxu0 0.0
    %1996 = vmatpush2.msra.mxu0 0.0
    %1997 = vmatprep.subr.mxu0 0.0
    %1998 = vmatpush2.msra.mxu0 0.0
    %1999 = vmatprep.subr.mxu0 0.0
    %2000 = vmatpush2.msra.mxu0 0.0
    %2001 = vmatprep.subr.mxu0 0.0
    %2002 = vmatpush2.msra.mxu0 0.0
    %2003 = vmatprep.subr.mxu0 0.0
    %2004 = vmatpush2.msra.mxu0 0.0
    %2005 = vmatprep.subr.mxu0 0.0
    %2006 = vmatpush2.msra.mxu0 0.0
    %2007 = vmatprep.subr.mxu0 0.0
    %2008 = vmatpush2.msra.mxu0 0.0
    %2009 = vmatprep.subr.mxu0 0.0
    %2010 = vmatpush2.msra.mxu0 0.0
    %2011 = vmatprep.subr.mxu0 0.0
    %2012 = vmatpush2.msra.mxu0 0.0
    %2013 = vmatprep.mubr.f32.mxu0 0.0
    %2014 = vmatmul.mubr.f32.gmra.mxu0 %v1947
    %v2015 = vpop.f32.mrf.mxu0
    %v2016 = vadd.f32 %v1945, %v2015
    %v2017 = vpop.f32.mrf.mxu0
    %2018 = vdwg.mxu0
    %vm2019 = vcmask 254976
    %2020 = vst.msk [vmem:[#allocation4] sm:$0x3] %vm2019, %v2016
    // Predicated region
    $region14: #{tpu_custom_call.1} parent=1 // pred_check
      _
    $region15: #{tpu_custom_call.1} parent=1 // pred_check_branch
      %2022 = sbr.rel (0) target = $region17
    $region16: #{tpu_custom_call.1} parent=1 // pred_region
      %s2024 = ssub.s32 32, 32
      %2025 = vsyncadd [#allocation5], %s2024
      %s2027 = sshll.u32 [#allocation4], 4
      %s2028 = int_to_ptr.vmem [resolvable:$true] %s2027
      %2030 = dma.vmem_to_hbm [thread:$0]  %s2028, 32, %s4, [#allocation5]
    $region17: #{tpu_custom_call.1} parent=1 // pred_fallthru
      _
    // Predicated region
    $region18: #{tpu_custom_call.1} parent=1 // pred_check
      _
    $region19: #{tpu_custom_call.1} parent=1 // pred_check_branch
      %2032 = sbr.rel (0) target = $region21
    $region20: #{tpu_custom_call.1} parent=1 // pred_region
      %2033 = dma.done [#allocation5], 32
    $region21: #{tpu_custom_call.1} parent=1 // pred_fallthru
      _
    %2034 = vsyncpa [#allocation5], 1

</llo_original>
